<compile_context>
chip_gen: v5e
topology: v5e:2x2
jax: 0.10.0
libtpu: 0.0.40
codegen_flags: <defaults>
</compile_context>

<pallas_src>
import math

import jax
import jax.numpy as jnp
from jax.experimental import pallas as pl
from jax.experimental.pallas import tpu as pltpu

_BN_EPS = 1e-5


def _pad_same(x, pad_left, pad_right):
    """Zero-pad along the length (second) axis of an (N, L, C) value."""
    n, _, c = x.shape
    parts = []
    if pad_left:
        parts.append(jnp.zeros((n, pad_left, c), x.dtype))
    parts.append(x)
    if pad_right:
        parts.append(jnp.zeros((n, pad_right, c), x.dtype))
    if len(parts) == 1:
        return x
    return jnp.concatenate(parts, axis=1)


def _im2col(x, k_taps, pad_left, pad_right):
    """(N, L, C) -> (N*L, K*C) sliding-window matmul operand for a 'same' conv."""
    n, length, c = x.shape
    xp = _pad_same(x, pad_left, pad_right)                 # (N, L+K-1, C)
    cols = jnp.concatenate([xp[:, k:k + length, :] for k in range(k_taps)],
                           axis=-1)                        # (N, L, K*C)
    return cols.reshape(n * length, k_taps * c)


def _batchnorm_relu(y, gamma, beta):
    """Training-mode BatchNorm1d (batch stats over the N*L rows) + ReLU, f32.

    Two-pass (centered) variance for accuracy; BN applied as a fused
    per-channel scale/shift of the already-centered activations:
        out = max((y - mean) * (gamma * rsqrt(var + eps)) + beta, 0)
    """
    mean = jnp.mean(y, axis=0, keepdims=True)
    d = y - mean
    var = jnp.mean(d * d, axis=0, keepdims=True)
    scale = gamma * jax.lax.rsqrt(var + _BN_EPS)
    return jnp.maximum(d * scale + beta, 0.0)


def _msblock(h_bf16, k_taps, pad_left, pad_right,
             w1_ref, g1_ref, be1_ref, w2d_ref, g2_ref, be2_ref):
    """One MSBlock on a (N, L, Cin) bf16 block input -> (N, L, Cout) f32 output.

    The single bf16 copy of the block input feeds BOTH the conv1 im2col
    operand and the 1x1-downsample operand.  Conv biases are omitted: they are
    cancelled exactly by the training-mode BatchNorm mean subtraction.
    """
    n, length, cin = h_bf16.shape
    cout = w1_ref.shape[1]                                  # w1 folded (K*Cin, Cout)

    # conv1: single bf16 MXU matmul over the folded K*Cin contraction.
    cols1 = _im2col(h_bf16, k_taps, pad_left, pad_right)    # (N*L, K*Cin) bf16
    y1 = jnp.dot(cols1, w1_ref[...], preferred_element_type=jnp.float32)
    h1 = _batchnorm_relu(y1, g1_ref[...], be1_ref[...])     # (N*L, Cout) f32
    h1 = h1.reshape(n, length, cout).astype(jnp.bfloat16)   # cast once

    # conv2 + 1x1 downsample fused into ONE matmul (contraction K*Cout + Cin).
    cols2 = _im2col(h1, k_taps, pad_left, pad_right)        # (N*L, K*Cout) bf16
    xflat = h_bf16.reshape(n * length, cin)                 # (N*L, Cin)   bf16
    cols_cat = jnp.concatenate([cols2, xflat], axis=-1)     # (N*L, K*Cout+Cin)
    y2 = jnp.dot(cols_cat, w2d_ref[...], preferred_element_type=jnp.float32)

    out = _batchnorm_relu(y2, g2_ref[...], be2_ref[...])
    return out.reshape(n, length, cout)                     # f32


def make_residual_blocks_kernel(n_blocks, k_taps, n_batch):
    pad_left = (k_taps - 1) // 2
    pad_right = (k_taps - 1) - pad_left

    def kernel(*refs):
        x_ref = refs[0]            # (N, C0, L) f32, PyTorch NCL layout
        o_ref = refs[-1]           # (N, Cf, L) f32
        param_refs = refs[1:-1]

        # NCL -> NLC inside the kernel (per-batch 2-D transposes, XLU slot).
        h = jnp.stack([x_ref[i].T for i in range(n_batch)], axis=0)  # (N,L,C0) f32

        for b in range(n_blocks):
            block_refs = param_refs[b * 6:(b + 1) * 6]
            h = _msblock(h.astype(jnp.bfloat16), k_taps, pad_left, pad_right,
                         *block_refs)                                # f32

        # NLC -> NCL on the way out; per-batch store.
        for i in range(n_batch):
            o_ref[i] = h[i].T.astype(o_ref.dtype)

    return kernel


def _pick_vmem_limit_bytes():
    """~3/4 of physical VMEM: ~96 MiB on v5e/v6e (128 MiB), ~48 MiB on v7x (64 MiB)."""
    cap = 64 * 1024 * 1024
    try:
        info = pltpu.get_tpu_info()
        cap = int(getattr(info, "vmem_capacity_bytes", cap))
    except Exception:
        pass
    return int(min(cap // 4 * 3, 100 * 1024 * 1024))


def residual_blocks(x_ncl, params_list, scale):
    """ResidualBlocks.forward. x_ncl is PyTorch-layout (N, C, L) float32."""
    n, _, length = x_ncl.shape

    # Host-side (one-time) weight folding:
    #  * conv weights folded for im2col: (K, Ci, Co) -> (K*Ci, Co), bf16
    #  * conv2 and the 1x1 downsample stacked along the contraction so the
    #    second stage is a single MXU matmul
    #  * conv biases dropped (exactly cancelled by training-mode BatchNorm)
    flat_params = []
    for p in params_list:
        k, cin, cout = p["w1"].shape
        w1f = p["w1"].reshape(k * cin, cout).astype(jnp.bfloat16)
        w2d = jnp.concatenate([p["w2"].reshape(k * cout, cout), p["wd"]],
                              axis=0).astype(jnp.bfloat16)
        flat_params += [w1f, p["g1"], p["be1"], w2d, p["g2"], p["be2"]]

    cout_final = params_list[-1]["w1"].shape[2]
    kernel = make_residual_blocks_kernel(len(params_list), scale, n)
    vmem = pl.BlockSpec(memory_space=pltpu.MemorySpace.VMEM)
    return pl.pallas_call(
        kernel,
        out_shape=jax.ShapeDtypeStruct((n, cout_final, length), jnp.float32),
        in_specs=[vmem] * (1 + len(flat_params)),
        out_specs=vmem,
        compiler_params=pltpu.CompilerParams(
            vmem_limit_bytes=_pick_vmem_limit_bytes()),
    )(x_ncl, *flat_params)


def init_msblock_params(key, cin, cout, k):
    """Deterministic parameters matching PyTorch layer shapes / default init.

    Conv biases (b1/b2/bd) are generated for parity with torch's Conv1d but are
    NOT used by the kernel: with training-mode BatchNorm immediately after each
    conv (+residual) they are cancelled exactly by the mean subtraction.
    """
    ks = jax.random.split(key, 6)
    b1w = 1.0 / math.sqrt(cin * k)
    b2w = 1.0 / math.sqrt(cout * k)
    bdw = 1.0 / math.sqrt(cin * 1)
    return {
        # Conv1d weights are (out_c, in_c, K) in torch; stored here as (K, in_c, out_c).
        "w1": jax.random.uniform(ks[0], (k, cin, cout), jnp.float32, -b1w, b1w),
        "b1": jax.random.uniform(ks[1], (1, cout), jnp.float32, -b1w, b1w),
        "w2": jax.random.uniform(ks[2], (k, cout, cout), jnp.float32, -b2w, b2w),
        "b2": jax.random.uniform(ks[3], (1, cout), jnp.float32, -b2w, b2w),
        "wd": jax.random.uniform(ks[4], (cin, cout), jnp.float32, -bdw, bdw),
        "bd": jax.random.uniform(ks[5], (1, cout), jnp.float32, -bdw, bdw),
        # BatchNorm affine params (torch default init: gamma=1, beta=0)
        "g1": jnp.ones((1, cout), jnp.float32),
        "be1": jnp.zeros((1, cout), jnp.float32),
        "g2": jnp.ones((1, cout), jnp.float32),
        "be2": jnp.zeros((1, cout), jnp.float32),
    }


if __name__ == "__main__":
    N, Cin, L = 2, 4, 16
    scale = 3
    expansion = 2
    n_blocks = 3

    key = jax.random.PRNGKey(0)
    kx, kp = jax.random.split(key)
    x = jax.random.normal(kx, (N, Cin, L), jnp.float32)  # PyTorch NCL input

    params_list = []
    c = Cin
    pkeys = jax.random.split(kp, n_blocks)
    for i in range(n_blocks):
        params_list.append(init_msblock_params(pkeys[i], c, c * expansion, scale))
        c *= expansion

    out = residual_blocks(x, params_list, scale)
    jax.block_until_ready(out)
    assert out.shape == (N, Cin * (expansion ** n_blocks), L), out.shape
    print("KERNEL_OK")
</pallas_src>

<mosaic_0001>
module attributes {stable_mosaic.version = 11 : i64} {
  func.func @kernel(%arg0: memref<2x4x16xf32, #tpu.memory_space<vmem>>, %arg1: memref<12x8xbf16, #tpu.memory_space<vmem>>, %arg2: memref<1x8xf32, #tpu.memory_space<vmem>>, %arg3: memref<1x8xf32, #tpu.memory_space<vmem>>, %arg4: memref<28x8xbf16, #tpu.memory_space<vmem>>, %arg5: memref<1x8xf32, #tpu.memory_space<vmem>>, %arg6: memref<1x8xf32, #tpu.memory_space<vmem>>, %arg7: memref<24x16xbf16, #tpu.memory_space<vmem>>, %arg8: memref<1x16xf32, #tpu.memory_space<vmem>>, %arg9: memref<1x16xf32, #tpu.memory_space<vmem>>, %arg10: memref<56x16xbf16, #tpu.memory_space<vmem>>, %arg11: memref<1x16xf32, #tpu.memory_space<vmem>>, %arg12: memref<1x16xf32, #tpu.memory_space<vmem>>, %arg13: memref<48x32xbf16, #tpu.memory_space<vmem>>, %arg14: memref<1x32xf32, #tpu.memory_space<vmem>>, %arg15: memref<1x32xf32, #tpu.memory_space<vmem>>, %arg16: memref<112x32xbf16, #tpu.memory_space<vmem>>, %arg17: memref<1x32xf32, #tpu.memory_space<vmem>>, %arg18: memref<1x32xf32, #tpu.memory_space<vmem>>, %arg19: memref<2x32x16xf32, #tpu.memory_space<vmem>>) attributes {dimension_semantics = [], scalar_prefetch = 0 : i64, scratch_operands = 0 : i64, tpu.core_type = #tpu.core_type<tc>} {
    %c0 = arith.constant 0 : index
    %c0_0 = arith.constant 0 : index
    %c0_1 = arith.constant 0 : index
    %0 = vector.load %arg0[%c0, %c0_0, %c0_1] : memref<2x4x16xf32, #tpu.memory_space<vmem>>, vector<1x4x16xf32>
    %1 = vector.shape_cast %0 : vector<1x4x16xf32> to vector<4x16xf32>
    %2 = tpu.transpose %1, [1, 0] : vector<4x16xf32> -> vector<16x4xf32>
    %c1 = arith.constant 1 : index
    %c0_2 = arith.constant 0 : index
    %c0_3 = arith.constant 0 : index
    %3 = vector.load %arg0[%c1, %c0_2, %c0_3] : memref<2x4x16xf32, #tpu.memory_space<vmem>>, vector<1x4x16xf32>
    %4 = vector.shape_cast %3 : vector<1x4x16xf32> to vector<4x16xf32>
    %5 = tpu.transpose %4, [1, 0] : vector<4x16xf32> -> vector<16x4xf32>
    %6 = vector.shape_cast %2 : vector<16x4xf32> to vector<1x16x4xf32>
    %7 = vector.shape_cast %5 : vector<16x4xf32> to vector<1x16x4xf32>
    %8 = tpu.concatenate %6, %7 in 0 : vector<1x16x4xf32>, vector<1x16x4xf32> -> vector<2x16x4xf32>
    %9 = arith.truncf %8 : vector<2x16x4xf32> to vector<2x16x4xbf16>
    %cst = arith.constant 0.000000e+00 : bf16
    %10 = vector.broadcast %cst : bf16 to vector<2x1x4xbf16>
    %cst_4 = arith.constant 0.000000e+00 : bf16
    %11 = vector.broadcast %cst_4 : bf16 to vector<2x1x4xbf16>
    %12 = tpu.concatenate %10, %9, %11 in 1 : vector<2x1x4xbf16>, vector<2x16x4xbf16>, vector<2x1x4xbf16> -> vector<2x18x4xbf16>
    %13 = vector.extract_strided_slice %12 {offsets = [0, 0, 0], sizes = [2, 16, 4], strides = [1, 1, 1]} : vector<2x18x4xbf16> to vector<2x16x4xbf16>
    %14 = vector.extract_strided_slice %12 {offsets = [0, 1, 0], sizes = [2, 16, 4], strides = [1, 1, 1]} : vector<2x18x4xbf16> to vector<2x16x4xbf16>
    %15 = vector.extract_strided_slice %12 {offsets = [0, 2, 0], sizes = [2, 16, 4], strides = [1, 1, 1]} : vector<2x18x4xbf16> to vector<2x16x4xbf16>
    %16 = tpu.concatenate %13, %14, %15 in 2 : vector<2x16x4xbf16>, vector<2x16x4xbf16>, vector<2x16x4xbf16> -> vector<2x16x12xbf16>
    %17 = vector.shape_cast %16 : vector<2x16x12xbf16> to vector<32x12xbf16>
    %c0_5 = arith.constant 0 : index
    %c0_6 = arith.constant 0 : index
    %18 = vector.load %arg1[%c0_5, %c0_6] : memref<12x8xbf16, #tpu.memory_space<vmem>>, vector<12x8xbf16>
    %cst_7 = arith.constant dense<0.000000e+00> : vector<32x8xf32>
    %19 = tpu.matmul %17, %18, %cst_7 {dimension_numbers = #tpu.dot_dimension_numbers<[1], [0], [0], [1], [0, 0, 1, 1], [], []>} : vector<32x12xbf16>, vector<12x8xbf16>, vector<32x8xf32> -> vector<32x8xf32>
    %c0_8 = arith.constant 0 : index
    %c0_9 = arith.constant 0 : index
    %20 = vector.load %arg2[%c0_8, %c0_9] : memref<1x8xf32, #tpu.memory_space<vmem>>, vector<1x8xf32>
    %c0_10 = arith.constant 0 : index
    %c0_11 = arith.constant 0 : index
    %21 = vector.load %arg3[%c0_10, %c0_11] : memref<1x8xf32, #tpu.memory_space<vmem>>, vector<1x8xf32>
    %cst_12 = arith.constant dense<0.000000e+00> : vector<8xf32>
    %22 = vector.multi_reduction <add>, %19, %cst_12 [0] : vector<32x8xf32> to vector<8xf32>
    %23 = vector.shape_cast %22 : vector<8xf32> to vector<1x8xf32>
    %cst_13 = arith.constant 3.200000e+01 : f32
    %24 = vector.broadcast %cst_13 : f32 to vector<1x8xf32>
    %25 = arith.divf %23, %24 : vector<1x8xf32>
    %26 = vector.broadcast %25 : vector<1x8xf32> to vector<32x8xf32>
    %27 = arith.subf %19, %26 : vector<32x8xf32>
    %28 = arith.mulf %27, %27 : vector<32x8xf32>
    %cst_14 = arith.constant dense<0.000000e+00> : vector<8xf32>
    %29 = vector.multi_reduction <add>, %28, %cst_14 [0] : vector<32x8xf32> to vector<8xf32>
    %30 = vector.shape_cast %29 : vector<8xf32> to vector<1x8xf32>
    %cst_15 = arith.constant 3.200000e+01 : f32
    %31 = vector.broadcast %cst_15 : f32 to vector<1x8xf32>
    %32 = arith.divf %30, %31 : vector<1x8xf32>
    %cst_16 = arith.constant 9.99999974E-6 : f32
    %33 = vector.broadcast %cst_16 : f32 to vector<1x8xf32>
    %34 = arith.addf %32, %33 : vector<1x8xf32>
    %35 = math.rsqrt %34 : vector<1x8xf32>
    %36 = arith.mulf %20, %35 : vector<1x8xf32>
    %37 = vector.broadcast %36 : vector<1x8xf32> to vector<32x8xf32>
    %38 = arith.mulf %27, %37 : vector<32x8xf32>
    %39 = vector.broadcast %21 : vector<1x8xf32> to vector<32x8xf32>
    %40 = arith.addf %38, %39 : vector<32x8xf32>
    %cst_17 = arith.constant 0.000000e+00 : f32
    %41 = vector.broadcast %cst_17 : f32 to vector<32x8xf32>
    %42 = arith.maximumf %40, %41 : vector<32x8xf32>
    %43 = vector.shape_cast %42 : vector<32x8xf32> to vector<2x16x8xf32>
    %44 = arith.truncf %43 : vector<2x16x8xf32> to vector<2x16x8xbf16>
    %cst_18 = arith.constant 0.000000e+00 : bf16
    %45 = vector.broadcast %cst_18 : bf16 to vector<2x1x8xbf16>
    %cst_19 = arith.constant 0.000000e+00 : bf16
    %46 = vector.broadcast %cst_19 : bf16 to vector<2x1x8xbf16>
    %47 = tpu.concatenate %45, %44, %46 in 1 : vector<2x1x8xbf16>, vector<2x16x8xbf16>, vector<2x1x8xbf16> -> vector<2x18x8xbf16>
    %48 = vector.extract_strided_slice %47 {offsets = [0, 0, 0], sizes = [2, 16, 8], strides = [1, 1, 1]} : vector<2x18x8xbf16> to vector<2x16x8xbf16>
    %49 = vector.extract_strided_slice %47 {offsets = [0, 1, 0], sizes = [2, 16, 8], strides = [1, 1, 1]} : vector<2x18x8xbf16> to vector<2x16x8xbf16>
    %50 = vector.extract_strided_slice %47 {offsets = [0, 2, 0], sizes = [2, 16, 8], strides = [1, 1, 1]} : vector<2x18x8xbf16> to vector<2x16x8xbf16>
    %51 = tpu.concatenate %48, %49, %50 in 2 : vector<2x16x8xbf16>, vector<2x16x8xbf16>, vector<2x16x8xbf16> -> vector<2x16x24xbf16>
    %52 = vector.shape_cast %51 : vector<2x16x24xbf16> to vector<32x24xbf16>
    %53 = vector.shape_cast %9 : vector<2x16x4xbf16> to vector<32x4xbf16>
    %54 = tpu.concatenate %52, %53 in 1 : vector<32x24xbf16>, vector<32x4xbf16> -> vector<32x28xbf16>
    %c0_20 = arith.constant 0 : index
    %c0_21 = arith.constant 0 : index
    %55 = vector.load %arg4[%c0_20, %c0_21] : memref<28x8xbf16, #tpu.memory_space<vmem>>, vector<28x8xbf16>
    %cst_22 = arith.constant dense<0.000000e+00> : vector<32x8xf32>
    %56 = tpu.matmul %54, %55, %cst_22 {dimension_numbers = #tpu.dot_dimension_numbers<[1], [0], [0], [1], [0, 0, 1, 1], [], []>} : vector<32x28xbf16>, vector<28x8xbf16>, vector<32x8xf32> -> vector<32x8xf32>
    %c0_23 = arith.constant 0 : index
    %c0_24 = arith.constant 0 : index
    %57 = vector.load %arg5[%c0_23, %c0_24] : memref<1x8xf32, #tpu.memory_space<vmem>>, vector<1x8xf32>
    %c0_25 = arith.constant 0 : index
    %c0_26 = arith.constant 0 : index
    %58 = vector.load %arg6[%c0_25, %c0_26] : memref<1x8xf32, #tpu.memory_space<vmem>>, vector<1x8xf32>
    %cst_27 = arith.constant dense<0.000000e+00> : vector<8xf32>
    %59 = vector.multi_reduction <add>, %56, %cst_27 [0] : vector<32x8xf32> to vector<8xf32>
    %60 = vector.shape_cast %59 : vector<8xf32> to vector<1x8xf32>
    %cst_28 = arith.constant 3.200000e+01 : f32
    %61 = vector.broadcast %cst_28 : f32 to vector<1x8xf32>
    %62 = arith.divf %60, %61 : vector<1x8xf32>
    %63 = vector.broadcast %62 : vector<1x8xf32> to vector<32x8xf32>
    %64 = arith.subf %56, %63 : vector<32x8xf32>
    %65 = arith.mulf %64, %64 : vector<32x8xf32>
    %cst_29 = arith.constant dense<0.000000e+00> : vector<8xf32>
    %66 = vector.multi_reduction <add>, %65, %cst_29 [0] : vector<32x8xf32> to vector<8xf32>
    %67 = vector.shape_cast %66 : vector<8xf32> to vector<1x8xf32>
    %cst_30 = arith.constant 3.200000e+01 : f32
    %68 = vector.broadcast %cst_30 : f32 to vector<1x8xf32>
    %69 = arith.divf %67, %68 : vector<1x8xf32>
    %cst_31 = arith.constant 9.99999974E-6 : f32
    %70 = vector.broadcast %cst_31 : f32 to vector<1x8xf32>
    %71 = arith.addf %69, %70 : vector<1x8xf32>
    %72 = math.rsqrt %71 : vector<1x8xf32>
    %73 = arith.mulf %57, %72 : vector<1x8xf32>
    %74 = vector.broadcast %73 : vector<1x8xf32> to vector<32x8xf32>
    %75 = arith.mulf %64, %74 : vector<32x8xf32>
    %76 = vector.broadcast %58 : vector<1x8xf32> to vector<32x8xf32>
    %77 = arith.addf %75, %76 : vector<32x8xf32>
    %cst_32 = arith.constant 0.000000e+00 : f32
    %78 = vector.broadcast %cst_32 : f32 to vector<32x8xf32>
    %79 = arith.maximumf %77, %78 : vector<32x8xf32>
    %80 = vector.shape_cast %79 : vector<32x8xf32> to vector<2x16x8xf32>
    %81 = arith.truncf %80 : vector<2x16x8xf32> to vector<2x16x8xbf16>
    %cst_33 = arith.constant 0.000000e+00 : bf16
    %82 = vector.broadcast %cst_33 : bf16 to vector<2x1x8xbf16>
    %cst_34 = arith.constant 0.000000e+00 : bf16
    %83 = vector.broadcast %cst_34 : bf16 to vector<2x1x8xbf16>
    %84 = tpu.concatenate %82, %81, %83 in 1 : vector<2x1x8xbf16>, vector<2x16x8xbf16>, vector<2x1x8xbf16> -> vector<2x18x8xbf16>
    %85 = vector.extract_strided_slice %84 {offsets = [0, 0, 0], sizes = [2, 16, 8], strides = [1, 1, 1]} : vector<2x18x8xbf16> to vector<2x16x8xbf16>
    %86 = vector.extract_strided_slice %84 {offsets = [0, 1, 0], sizes = [2, 16, 8], strides = [1, 1, 1]} : vector<2x18x8xbf16> to vector<2x16x8xbf16>
    %87 = vector.extract_strided_slice %84 {offsets = [0, 2, 0], sizes = [2, 16, 8], strides = [1, 1, 1]} : vector<2x18x8xbf16> to vector<2x16x8xbf16>
    %88 = tpu.concatenate %85, %86, %87 in 2 : vector<2x16x8xbf16>, vector<2x16x8xbf16>, vector<2x16x8xbf16> -> vector<2x16x24xbf16>
    %89 = vector.shape_cast %88 : vector<2x16x24xbf16> to vector<32x24xbf16>
    %c0_35 = arith.constant 0 : index
    %c0_36 = arith.constant 0 : index
    %90 = vector.load %arg7[%c0_35, %c0_36] : memref<24x16xbf16, #tpu.memory_space<vmem>>, vector<24x16xbf16>
    %cst_37 = arith.constant dense<0.000000e+00> : vector<32x16xf32>
    %91 = tpu.matmul %89, %90, %cst_37 {dimension_numbers = #tpu.dot_dimension_numbers<[1], [0], [0], [1], [0, 0, 1, 1], [], []>} : vector<32x24xbf16>, vector<24x16xbf16>, vector<32x16xf32> -> vector<32x16xf32>
    %c0_38 = arith.constant 0 : index
    %c0_39 = arith.constant 0 : index
    %92 = vector.load %arg8[%c0_38, %c0_39] : memref<1x16xf32, #tpu.memory_space<vmem>>, vector<1x16xf32>
    %c0_40 = arith.constant 0 : index
    %c0_41 = arith.constant 0 : index
    %93 = vector.load %arg9[%c0_40, %c0_41] : memref<1x16xf32, #tpu.memory_space<vmem>>, vector<1x16xf32>
    %cst_42 = arith.constant dense<0.000000e+00> : vector<16xf32>
    %94 = vector.multi_reduction <add>, %91, %cst_42 [0] : vector<32x16xf32> to vector<16xf32>
    %95 = vector.shape_cast %94 : vector<16xf32> to vector<1x16xf32>
    %cst_43 = arith.constant 3.200000e+01 : f32
    %96 = vector.broadcast %cst_43 : f32 to vector<1x16xf32>
    %97 = arith.divf %95, %96 : vector<1x16xf32>
    %98 = vector.broadcast %97 : vector<1x16xf32> to vector<32x16xf32>
    %99 = arith.subf %91, %98 : vector<32x16xf32>
    %100 = arith.mulf %99, %99 : vector<32x16xf32>
    %cst_44 = arith.constant dense<0.000000e+00> : vector<16xf32>
    %101 = vector.multi_reduction <add>, %100, %cst_44 [0] : vector<32x16xf32> to vector<16xf32>
    %102 = vector.shape_cast %101 : vector<16xf32> to vector<1x16xf32>
    %cst_45 = arith.constant 3.200000e+01 : f32
    %103 = vector.broadcast %cst_45 : f32 to vector<1x16xf32>
    %104 = arith.divf %102, %103 : vector<1x16xf32>
    %cst_46 = arith.constant 9.99999974E-6 : f32
    %105 = vector.broadcast %cst_46 : f32 to vector<1x16xf32>
    %106 = arith.addf %104, %105 : vector<1x16xf32>
    %107 = math.rsqrt %106 : vector<1x16xf32>
    %108 = arith.mulf %92, %107 : vector<1x16xf32>
    %109 = vector.broadcast %108 : vector<1x16xf32> to vector<32x16xf32>
    %110 = arith.mulf %99, %109 : vector<32x16xf32>
    %111 = vector.broadcast %93 : vector<1x16xf32> to vector<32x16xf32>
    %112 = arith.addf %110, %111 : vector<32x16xf32>
    %cst_47 = arith.constant 0.000000e+00 : f32
    %113 = vector.broadcast %cst_47 : f32 to vector<32x16xf32>
    %114 = arith.maximumf %112, %113 : vector<32x16xf32>
    %115 = vector.shape_cast %114 : vector<32x16xf32> to vector<2x16x16xf32>
    %116 = arith.truncf %115 : vector<2x16x16xf32> to vector<2x16x16xbf16>
    %cst_48 = arith.constant 0.000000e+00 : bf16
    %117 = vector.broadcast %cst_48 : bf16 to vector<2x1x16xbf16>
    %cst_49 = arith.constant 0.000000e+00 : bf16
    %118 = vector.broadcast %cst_49 : bf16 to vector<2x1x16xbf16>
    %119 = tpu.concatenate %117, %116, %118 in 1 : vector<2x1x16xbf16>, vector<2x16x16xbf16>, vector<2x1x16xbf16> -> vector<2x18x16xbf16>
    %120 = vector.extract_strided_slice %119 {offsets = [0, 0, 0], sizes = [2, 16, 16], strides = [1, 1, 1]} : vector<2x18x16xbf16> to vector<2x16x16xbf16>
    %121 = vector.extract_strided_slice %119 {offsets = [0, 1, 0], sizes = [2, 16, 16], strides = [1, 1, 1]} : vector<2x18x16xbf16> to vector<2x16x16xbf16>
    %122 = vector.extract_strided_slice %119 {offsets = [0, 2, 0], sizes = [2, 16, 16], strides = [1, 1, 1]} : vector<2x18x16xbf16> to vector<2x16x16xbf16>
    %123 = tpu.concatenate %120, %121, %122 in 2 : vector<2x16x16xbf16>, vector<2x16x16xbf16>, vector<2x16x16xbf16> -> vector<2x16x48xbf16>
    %124 = vector.shape_cast %123 : vector<2x16x48xbf16> to vector<32x48xbf16>
    %125 = vector.shape_cast %81 : vector<2x16x8xbf16> to vector<32x8xbf16>
    %126 = tpu.concatenate %124, %125 in 1 : vector<32x48xbf16>, vector<32x8xbf16> -> vector<32x56xbf16>
    %c0_50 = arith.constant 0 : index
    %c0_51 = arith.constant 0 : index
    %127 = vector.load %arg10[%c0_50, %c0_51] : memref<56x16xbf16, #tpu.memory_space<vmem>>, vector<56x16xbf16>
    %cst_52 = arith.constant dense<0.000000e+00> : vector<32x16xf32>
    %128 = tpu.matmul %126, %127, %cst_52 {dimension_numbers = #tpu.dot_dimension_numbers<[1], [0], [0], [1], [0, 0, 1, 1], [], []>} : vector<32x56xbf16>, vector<56x16xbf16>, vector<32x16xf32> -> vector<32x16xf32>
    %c0_53 = arith.constant 0 : index
    %c0_54 = arith.constant 0 : index
    %129 = vector.load %arg11[%c0_53, %c0_54] : memref<1x16xf32, #tpu.memory_space<vmem>>, vector<1x16xf32>
    %c0_55 = arith.constant 0 : index
    %c0_56 = arith.constant 0 : index
    %130 = vector.load %arg12[%c0_55, %c0_56] : memref<1x16xf32, #tpu.memory_space<vmem>>, vector<1x16xf32>
    %cst_57 = arith.constant dense<0.000000e+00> : vector<16xf32>
    %131 = vector.multi_reduction <add>, %128, %cst_57 [0] : vector<32x16xf32> to vector<16xf32>
    %132 = vector.shape_cast %131 : vector<16xf32> to vector<1x16xf32>
    %cst_58 = arith.constant 3.200000e+01 : f32
    %133 = vector.broadcast %cst_58 : f32 to vector<1x16xf32>
    %134 = arith.divf %132, %133 : vector<1x16xf32>
    %135 = vector.broadcast %134 : vector<1x16xf32> to vector<32x16xf32>
    %136 = arith.subf %128, %135 : vector<32x16xf32>
    %137 = arith.mulf %136, %136 : vector<32x16xf32>
    %cst_59 = arith.constant dense<0.000000e+00> : vector<16xf32>
    %138 = vector.multi_reduction <add>, %137, %cst_59 [0] : vector<32x16xf32> to vector<16xf32>
    %139 = vector.shape_cast %138 : vector<16xf32> to vector<1x16xf32>
    %cst_60 = arith.constant 3.200000e+01 : f32
    %140 = vector.broadcast %cst_60 : f32 to vector<1x16xf32>
    %141 = arith.divf %139, %140 : vector<1x16xf32>
    %cst_61 = arith.constant 9.99999974E-6 : f32
    %142 = vector.broadcast %cst_61 : f32 to vector<1x16xf32>
    %143 = arith.addf %141, %142 : vector<1x16xf32>
    %144 = math.rsqrt %143 : vector<1x16xf32>
    %145 = arith.mulf %129, %144 : vector<1x16xf32>
    %146 = vector.broadcast %145 : vector<1x16xf32> to vector<32x16xf32>
    %147 = arith.mulf %136, %146 : vector<32x16xf32>
    %148 = vector.broadcast %130 : vector<1x16xf32> to vector<32x16xf32>
    %149 = arith.addf %147, %148 : vector<32x16xf32>
    %cst_62 = arith.constant 0.000000e+00 : f32
    %150 = vector.broadcast %cst_62 : f32 to vector<32x16xf32>
    %151 = arith.maximumf %149, %150 : vector<32x16xf32>
    %152 = vector.shape_cast %151 : vector<32x16xf32> to vector<2x16x16xf32>
    %153 = arith.truncf %152 : vector<2x16x16xf32> to vector<2x16x16xbf16>
    %cst_63 = arith.constant 0.000000e+00 : bf16
    %154 = vector.broadcast %cst_63 : bf16 to vector<2x1x16xbf16>
    %cst_64 = arith.constant 0.000000e+00 : bf16
    %155 = vector.broadcast %cst_64 : bf16 to vector<2x1x16xbf16>
    %156 = tpu.concatenate %154, %153, %155 in 1 : vector<2x1x16xbf16>, vector<2x16x16xbf16>, vector<2x1x16xbf16> -> vector<2x18x16xbf16>
    %157 = vector.extract_strided_slice %156 {offsets = [0, 0, 0], sizes = [2, 16, 16], strides = [1, 1, 1]} : vector<2x18x16xbf16> to vector<2x16x16xbf16>
    %158 = vector.extract_strided_slice %156 {offsets = [0, 1, 0], sizes = [2, 16, 16], strides = [1, 1, 1]} : vector<2x18x16xbf16> to vector<2x16x16xbf16>
    %159 = vector.extract_strided_slice %156 {offsets = [0, 2, 0], sizes = [2, 16, 16], strides = [1, 1, 1]} : vector<2x18x16xbf16> to vector<2x16x16xbf16>
    %160 = tpu.concatenate %157, %158, %159 in 2 : vector<2x16x16xbf16>, vector<2x16x16xbf16>, vector<2x16x16xbf16> -> vector<2x16x48xbf16>
    %161 = vector.shape_cast %160 : vector<2x16x48xbf16> to vector<32x48xbf16>
    %c0_65 = arith.constant 0 : index
    %c0_66 = arith.constant 0 : index
    %162 = vector.load %arg13[%c0_65, %c0_66] : memref<48x32xbf16, #tpu.memory_space<vmem>>, vector<48x32xbf16>
    %cst_67 = arith.constant dense<0.000000e+00> : vector<32x32xf32>
    %163 = tpu.matmul %161, %162, %cst_67 {dimension_numbers = #tpu.dot_dimension_numbers<[1], [0], [0], [1], [0, 0, 1, 1], [], []>} : vector<32x48xbf16>, vector<48x32xbf16>, vector<32x32xf32> -> vector<32x32xf32>
    %c0_68 = arith.constant 0 : index
    %c0_69 = arith.constant 0 : index
    %164 = vector.load %arg14[%c0_68, %c0_69] : memref<1x32xf32, #tpu.memory_space<vmem>>, vector<1x32xf32>
    %c0_70 = arith.constant 0 : index
    %c0_71 = arith.constant 0 : index
    %165 = vector.load %arg15[%c0_70, %c0_71] : memref<1x32xf32, #tpu.memory_space<vmem>>, vector<1x32xf32>
    %cst_72 = arith.constant dense<0.000000e+00> : vector<32xf32>
    %166 = vector.multi_reduction <add>, %163, %cst_72 [0] : vector<32x32xf32> to vector<32xf32>
    %167 = vector.shape_cast %166 : vector<32xf32> to vector<1x32xf32>
    %cst_73 = arith.constant 3.200000e+01 : f32
    %168 = vector.broadcast %cst_73 : f32 to vector<1x32xf32>
    %169 = arith.divf %167, %168 : vector<1x32xf32>
    %170 = vector.broadcast %169 : vector<1x32xf32> to vector<32x32xf32>
    %171 = arith.subf %163, %170 : vector<32x32xf32>
    %172 = arith.mulf %171, %171 : vector<32x32xf32>
    %cst_74 = arith.constant dense<0.000000e+00> : vector<32xf32>
    %173 = vector.multi_reduction <add>, %172, %cst_74 [0] : vector<32x32xf32> to vector<32xf32>
    %174 = vector.shape_cast %173 : vector<32xf32> to vector<1x32xf32>
    %cst_75 = arith.constant 3.200000e+01 : f32
    %175 = vector.broadcast %cst_75 : f32 to vector<1x32xf32>
    %176 = arith.divf %174, %175 : vector<1x32xf32>
    %cst_76 = arith.constant 9.99999974E-6 : f32
    %177 = vector.broadcast %cst_76 : f32 to vector<1x32xf32>
    %178 = arith.addf %176, %177 : vector<1x32xf32>
    %179 = math.rsqrt %178 : vector<1x32xf32>
    %180 = arith.mulf %164, %179 : vector<1x32xf32>
    %181 = vector.broadcast %180 : vector<1x32xf32> to vector<32x32xf32>
    %182 = arith.mulf %171, %181 : vector<32x32xf32>
    %183 = vector.broadcast %165 : vector<1x32xf32> to vector<32x32xf32>
    %184 = arith.addf %182, %183 : vector<32x32xf32>
    %cst_77 = arith.constant 0.000000e+00 : f32
    %185 = vector.broadcast %cst_77 : f32 to vector<32x32xf32>
    %186 = arith.maximumf %184, %185 : vector<32x32xf32>
    %187 = vector.shape_cast %186 : vector<32x32xf32> to vector<2x16x32xf32>
    %188 = arith.truncf %187 : vector<2x16x32xf32> to vector<2x16x32xbf16>
    %cst_78 = arith.constant 0.000000e+00 : bf16
    %189 = vector.broadcast %cst_78 : bf16 to vector<2x1x32xbf16>
    %cst_79 = arith.constant 0.000000e+00 : bf16
    %190 = vector.broadcast %cst_79 : bf16 to vector<2x1x32xbf16>
    %191 = tpu.concatenate %189, %188, %190 in 1 : vector<2x1x32xbf16>, vector<2x16x32xbf16>, vector<2x1x32xbf16> -> vector<2x18x32xbf16>
    %192 = vector.extract_strided_slice %191 {offsets = [0, 0, 0], sizes = [2, 16, 32], strides = [1, 1, 1]} : vector<2x18x32xbf16> to vector<2x16x32xbf16>
    %193 = vector.extract_strided_slice %191 {offsets = [0, 1, 0], sizes = [2, 16, 32], strides = [1, 1, 1]} : vector<2x18x32xbf16> to vector<2x16x32xbf16>
    %194 = vector.extract_strided_slice %191 {offsets = [0, 2, 0], sizes = [2, 16, 32], strides = [1, 1, 1]} : vector<2x18x32xbf16> to vector<2x16x32xbf16>
    %195 = tpu.concatenate %192, %193, %194 in 2 : vector<2x16x32xbf16>, vector<2x16x32xbf16>, vector<2x16x32xbf16> -> vector<2x16x96xbf16>
    %196 = vector.shape_cast %195 : vector<2x16x96xbf16> to vector<32x96xbf16>
    %197 = vector.shape_cast %153 : vector<2x16x16xbf16> to vector<32x16xbf16>
    %198 = tpu.concatenate %196, %197 in 1 : vector<32x96xbf16>, vector<32x16xbf16> -> vector<32x112xbf16>
    %c0_80 = arith.constant 0 : index
    %c0_81 = arith.constant 0 : index
    %199 = vector.load %arg16[%c0_80, %c0_81] : memref<112x32xbf16, #tpu.memory_space<vmem>>, vector<112x32xbf16>
    %cst_82 = arith.constant dense<0.000000e+00> : vector<32x32xf32>
    %200 = tpu.matmul %198, %199, %cst_82 {dimension_numbers = #tpu.dot_dimension_numbers<[1], [0], [0], [1], [0, 0, 1, 1], [], []>} : vector<32x112xbf16>, vector<112x32xbf16>, vector<32x32xf32> -> vector<32x32xf32>
    %c0_83 = arith.constant 0 : index
    %c0_84 = arith.constant 0 : index
    %201 = vector.load %arg17[%c0_83, %c0_84] : memref<1x32xf32, #tpu.memory_space<vmem>>, vector<1x32xf32>
    %c0_85 = arith.constant 0 : index
    %c0_86 = arith.constant 0 : index
    %202 = vector.load %arg18[%c0_85, %c0_86] : memref<1x32xf32, #tpu.memory_space<vmem>>, vector<1x32xf32>
    %cst_87 = arith.constant dense<0.000000e+00> : vector<32xf32>
    %203 = vector.multi_reduction <add>, %200, %cst_87 [0] : vector<32x32xf32> to vector<32xf32>
    %204 = vector.shape_cast %203 : vector<32xf32> to vector<1x32xf32>
    %cst_88 = arith.constant 3.200000e+01 : f32
    %205 = vector.broadcast %cst_88 : f32 to vector<1x32xf32>
    %206 = arith.divf %204, %205 : vector<1x32xf32>
    %207 = vector.broadcast %206 : vector<1x32xf32> to vector<32x32xf32>
    %208 = arith.subf %200, %207 : vector<32x32xf32>
    %209 = arith.mulf %208, %208 : vector<32x32xf32>
    %cst_89 = arith.constant dense<0.000000e+00> : vector<32xf32>
    %210 = vector.multi_reduction <add>, %209, %cst_89 [0] : vector<32x32xf32> to vector<32xf32>
    %211 = vector.shape_cast %210 : vector<32xf32> to vector<1x32xf32>
    %cst_90 = arith.constant 3.200000e+01 : f32
    %212 = vector.broadcast %cst_90 : f32 to vector<1x32xf32>
    %213 = arith.divf %211, %212 : vector<1x32xf32>
    %cst_91 = arith.constant 9.99999974E-6 : f32
    %214 = vector.broadcast %cst_91 : f32 to vector<1x32xf32>
    %215 = arith.addf %213, %214 : vector<1x32xf32>
    %216 = math.rsqrt %215 : vector<1x32xf32>
    %217 = arith.mulf %201, %216 : vector<1x32xf32>
    %218 = vector.broadcast %217 : vector<1x32xf32> to vector<32x32xf32>
    %219 = arith.mulf %208, %218 : vector<32x32xf32>
    %220 = vector.broadcast %202 : vector<1x32xf32> to vector<32x32xf32>
    %221 = arith.addf %219, %220 : vector<32x32xf32>
    %cst_92 = arith.constant 0.000000e+00 : f32
    %222 = vector.broadcast %cst_92 : f32 to vector<32x32xf32>
    %223 = arith.maximumf %221, %222 : vector<32x32xf32>
    %224 = vector.shape_cast %223 : vector<32x32xf32> to vector<2x16x32xf32>
    %225 = vector.extract_strided_slice %224 {offsets = [0, 0, 0], sizes = [1, 16, 32], strides = [1, 1, 1]} : vector<2x16x32xf32> to vector<1x16x32xf32>
    %226 = vector.shape_cast %225 : vector<1x16x32xf32> to vector<16x32xf32>
    %227 = tpu.transpose %226, [1, 0] : vector<16x32xf32> -> vector<32x16xf32>
    %c0_93 = arith.constant 0 : index
    %c0_94 = arith.constant 0 : index
    %c0_95 = arith.constant 0 : index
    %228 = vector.load %arg19[%c0_93, %c0_94, %c0_95] : memref<2x32x16xf32, #tpu.memory_space<vmem>>, vector<1x32x16xf32>
    %229 = vector.shape_cast %228 : vector<1x32x16xf32> to vector<32x16xf32>
    %230 = vector.shape_cast %227 : vector<32x16xf32> to vector<1x32x16xf32>
    tpu.vector_store %arg19[%c0_93, %c0_94, %c0_95], %230 {strides = array<i32>} : memref<2x32x16xf32, #tpu.memory_space<vmem>>, vector<1x32x16xf32>,
    %231 = vector.extract_strided_slice %224 {offsets = [1, 0, 0], sizes = [1, 16, 32], strides = [1, 1, 1]} : vector<2x16x32xf32> to vector<1x16x32xf32>
    %232 = vector.shape_cast %231 : vector<1x16x32xf32> to vector<16x32xf32>
    %233 = tpu.transpose %232, [1, 0] : vector<16x32xf32> -> vector<32x16xf32>
    %c1_96 = arith.constant 1 : index
    %c0_97 = arith.constant 0 : index
    %c0_98 = arith.constant 0 : index
    %234 = vector.load %arg19[%c1_96, %c0_97, %c0_98] : memref<2x32x16xf32, #tpu.memory_space<vmem>>, vector<1x32x16xf32>
    %235 = vector.shape_cast %234 : vector<1x32x16xf32> to vector<32x16xf32>
    %236 = vector.shape_cast %233 : vector<32x16xf32> to vector<1x32x16xf32>
    tpu.vector_store %arg19[%c1_96, %c0_97, %c0_98], %236 {strides = array<i32>} : memref<2x32x16xf32, #tpu.memory_space<vmem>>, vector<1x32x16xf32>,
    return
  }
}

</mosaic_0001>

<llo_original>
// kernel: tpu_custom_call.1
$region0: #{tpu_custom_call.1}
  #allocation0 [shape = 'u32[]', space=smem, size = 0x4, offset = 0x4, fixed_abs, tag = 'smem constant byte address 0x4 - core index']
  #allocation1 [shape = 'u32[72,128]{1,0:T(1,128)}', space=vmem, size = 0x9000, scoped, tag = 'internal scratch']
  %s0 = inlined_call_operand.vmem [shape: f32[2,4,16], index: 0, kind: input, shape index: {}]
  %s1 = inlined_call_operand.vmem [shape: bf16[12,8], index: 1, kind: input, shape index: {}]
  %s2 = inlined_call_operand.vmem [shape: f32[1,8], index: 2, kind: input, shape index: {}]
  %s3 = inlined_call_operand.vmem [shape: f32[1,8], index: 3, kind: input, shape index: {}]
  %s4 = inlined_call_operand.vmem [shape: bf16[28,8], index: 4, kind: input, shape index: {}]
  %s5 = inlined_call_operand.vmem [shape: f32[1,8], index: 5, kind: input, shape index: {}]
  %s6 = inlined_call_operand.vmem [shape: f32[1,8], index: 6, kind: input, shape index: {}]
  %s7 = inlined_call_operand.vmem [shape: bf16[24,16], index: 7, kind: input, shape index: {}]
  %s8 = inlined_call_operand.vmem [shape: f32[1,16], index: 8, kind: input, shape index: {}]
  %s9 = inlined_call_operand.vmem [shape: f32[1,16], index: 9, kind: input, shape index: {}]
  %s10 = inlined_call_operand.vmem [shape: bf16[56,16], index: 10, kind: input, shape index: {}]
  %s11 = inlined_call_operand.vmem [shape: f32[1,16], index: 11, kind: input, shape index: {}]
  %s12 = inlined_call_operand.vmem [shape: f32[1,16], index: 12, kind: input, shape index: {}]
  %s13 = inlined_call_operand.vmem [shape: bf16[48,32], index: 13, kind: input, shape index: {}]
  %s14 = inlined_call_operand.vmem [shape: f32[1,32], index: 14, kind: input, shape index: {}]
  %s15 = inlined_call_operand.vmem [shape: f32[1,32], index: 15, kind: input, shape index: {}]
  %s16 = inlined_call_operand.vmem [shape: bf16[112,32], index: 16, kind: input, shape index: {}]
  %s17 = inlined_call_operand.vmem [shape: f32[1,32], index: 17, kind: input, shape index: {}]
  %s18 = inlined_call_operand.vmem [shape: f32[1,32], index: 18, kind: input, shape index: {}]
  %s19 = inlined_call_operand.vmem [shape: f32[2,32,16], index: 19, kind: output, shape index: {}]
  %s20 = sld [smem:[#allocation0]]
  $region86: #{tpu_custom_call.1} parent=0
    _
  %s22 = ssub.s32 1, %s20
  %s23 = scalar_select 0, %s22, %s20
  // Predicated region
  $region2: #{tpu_custom_call.1} parent=0 // pred_check
    _
  $region3: #{tpu_custom_call.1} parent=0 // pred_check_branch
    %25 = sbr.rel (0) target = $region5
  $region4: #{tpu_custom_call.1} parent=0 // pred_region
    _
  $region5: #{tpu_custom_call.1} parent=0 // pred_fallthru
    _
  // Predicated region
  $region6: #{tpu_custom_call.1} parent=0 // pred_check
    _
  $region7: #{tpu_custom_call.1} parent=0 // pred_check_branch
    %27 = sbr.rel (0) target = $region9
  $region8: #{tpu_custom_call.1} parent=0 // pred_region
    _
  $region9: #{tpu_custom_call.1} parent=0 // pred_fallthru
    _
  // Predicated region
  $region10: #{tpu_custom_call.1} parent=0 // pred_check
    _
  $region11: #{tpu_custom_call.1} parent=0 // pred_check_branch
    %29 = sbr.rel (0) target = $region13
  $region12: #{tpu_custom_call.1} parent=0 // pred_region
    _
  $region13: #{tpu_custom_call.1} parent=0 // pred_fallthru
    _
  // Predicated region
  $region14: #{tpu_custom_call.1} parent=0 // pred_check
    _
  $region15: #{tpu_custom_call.1} parent=0 // pred_check_branch
    %31 = sbr.rel (0) target = $region17
  $region16: #{tpu_custom_call.1} parent=0 // pred_region
    _
  $region17: #{tpu_custom_call.1} parent=0 // pred_fallthru
    _
  // Predicated region
  $region18: #{tpu_custom_call.1} parent=0 // pred_check
    _
  $region19: #{tpu_custom_call.1} parent=0 // pred_check_branch
    %33 = sbr.rel (0) target = $region21
  $region20: #{tpu_custom_call.1} parent=0 // pred_region
    _
  $region21: #{tpu_custom_call.1} parent=0 // pred_fallthru
    _
  // Predicated region
  $region22: #{tpu_custom_call.1} parent=0 // pred_check
    _
  $region23: #{tpu_custom_call.1} parent=0 // pred_check_branch
    %35 = sbr.rel (0) target = $region25
  $region24: #{tpu_custom_call.1} parent=0 // pred_region
    _
  $region25: #{tpu_custom_call.1} parent=0 // pred_fallthru
    _
  // Predicated region
  $region26: #{tpu_custom_call.1} parent=0 // pred_check
    _
  $region27: #{tpu_custom_call.1} parent=0 // pred_check_branch
    %37 = sbr.rel (0) target = $region29
  $region28: #{tpu_custom_call.1} parent=0 // pred_region
    _
  $region29: #{tpu_custom_call.1} parent=0 // pred_fallthru
    _
  // Predicated region
  $region30: #{tpu_custom_call.1} parent=0 // pred_check
    _
  $region31: #{tpu_custom_call.1} parent=0 // pred_check_branch
    %39 = sbr.rel (0) target = $region33
  $region32: #{tpu_custom_call.1} parent=0 // pred_region
    _
  $region33: #{tpu_custom_call.1} parent=0 // pred_fallthru
    _
  // Predicated region
  $region34: #{tpu_custom_call.1} parent=0 // pred_check
    _
  $region35: #{tpu_custom_call.1} parent=0 // pred_check_branch
    %41 = sbr.rel (0) target = $region37
  $region36: #{tpu_custom_call.1} parent=0 // pred_region
    _
  $region37: #{tpu_custom_call.1} parent=0 // pred_fallthru
    _
  // Predicated region
  $region38: #{tpu_custom_call.1} parent=0 // pred_check
    _
  $region39: #{tpu_custom_call.1} parent=0 // pred_check_branch
    %43 = sbr.rel (0) target = $region41
  $region40: #{tpu_custom_call.1} parent=0 // pred_region
    _
  $region41: #{tpu_custom_call.1} parent=0 // pred_fallthru
    _
  // Predicated region
  $region42: #{tpu_custom_call.1} parent=0 // pred_check
    _
  $region43: #{tpu_custom_call.1} parent=0 // pred_check_branch
    %45 = sbr.rel (0) target = $region45
  $region44: #{tpu_custom_call.1} parent=0 // pred_region
    _
  $region45: #{tpu_custom_call.1} parent=0 // pred_fallthru
    _
  // Predicated region
  $region46: #{tpu_custom_call.1} parent=0 // pred_check
    _
  $region47: #{tpu_custom_call.1} parent=0 // pred_check_branch
    %47 = sbr.rel (0) target = $region49
  $region48: #{tpu_custom_call.1} parent=0 // pred_region
    _
  $region49: #{tpu_custom_call.1} parent=0 // pred_fallthru
    _
  // Predicated region
  $region50: #{tpu_custom_call.1} parent=0 // pred_check
    _
  $region51: #{tpu_custom_call.1} parent=0 // pred_check_branch
    %49 = sbr.rel (0) target = $region53
  $region52: #{tpu_custom_call.1} parent=0 // pred_region
    _
  $region53: #{tpu_custom_call.1} parent=0 // pred_fallthru
    _
  // Predicated region
  $region54: #{tpu_custom_call.1} parent=0 // pred_check
    _
  $region55: #{tpu_custom_call.1} parent=0 // pred_check_branch
    %51 = sbr.rel (0) target = $region57
  $region56: #{tpu_custom_call.1} parent=0 // pred_region
    _
  $region57: #{tpu_custom_call.1} parent=0 // pred_fallthru
    _
  // Predicated region
  $region58: #{tpu_custom_call.1} parent=0 // pred_check
    _
  $region59: #{tpu_custom_call.1} parent=0 // pred_check_branch
    %53 = sbr.rel (0) target = $region61
  $region60: #{tpu_custom_call.1} parent=0 // pred_region
    _
  $region61: #{tpu_custom_call.1} parent=0 // pred_fallthru
    _
  // Predicated region
  $region62: #{tpu_custom_call.1} parent=0 // pred_check
    _
  $region63: #{tpu_custom_call.1} parent=0 // pred_check_branch
    %55 = sbr.rel (0) target = $region65
  $region64: #{tpu_custom_call.1} parent=0 // pred_region
    _
  $region65: #{tpu_custom_call.1} parent=0 // pred_fallthru
    _
  // Predicated region
  $region66: #{tpu_custom_call.1} parent=0 // pred_check
    _
  $region67: #{tpu_custom_call.1} parent=0 // pred_check_branch
    %57 = sbr.rel (0) target = $region69
  $region68: #{tpu_custom_call.1} parent=0 // pred_region
    _
  $region69: #{tpu_custom_call.1} parent=0 // pred_fallthru
    _
  // Predicated region
  $region70: #{tpu_custom_call.1} parent=0 // pred_check
    _
  $region71: #{tpu_custom_call.1} parent=0 // pred_check_branch
    %59 = sbr.rel (0) target = $region73
  $region72: #{tpu_custom_call.1} parent=0 // pred_region
    _
  $region73: #{tpu_custom_call.1} parent=0 // pred_fallthru
    _
  // Predicated region
  $region74: #{tpu_custom_call.1} parent=0 // pred_check
    _
  $region75: #{tpu_custom_call.1} parent=0 // pred_check_branch
    %61 = sbr.rel (0) target = $region77
  $region76: #{tpu_custom_call.1} parent=0 // pred_region
    _
  $region77: #{tpu_custom_call.1} parent=0 // pred_fallthru
    _
  %v63 = vld [vmem:[%s0] sm:$0xf]
  %64 = vxpose.xlu0.b32.start [1/16] %v63, 128
  %65 = vxpose.xlu0.b32.cont [2/16] 0.0, 128
  %66 = vxpose.xlu0.b32.cont [3/16] 0.0, 128
  %67 = vxpose.xlu0.b32.cont [4/16] 0.0, 128
  %68 = vxpose.xlu0.b32.cont [5/16] 0.0, 128
  %69 = vxpose.xlu0.b32.cont [6/16] 0.0, 128
  %70 = vxpose.xlu0.b32.cont [7/16] 0.0, 128
  %71 = vxpose.xlu0.b32.cont [8/16] 0.0, 128
  %72 = vxpose.xlu0.b32.cont [9/16] 0.0, 128
  %73 = vxpose.xlu0.b32.cont [10/16] 0.0, 128
  %74 = vxpose.xlu0.b32.cont [11/16] 0.0, 128
  %75 = vxpose.xlu0.b32.cont [12/16] 0.0, 128
  %76 = vxpose.xlu0.b32.cont [13/16] 0.0, 128
  %77 = vxpose.xlu0.b32.cont [14/16] 0.0, 128
  %78 = vxpose.xlu0.b32.cont [15/16] 0.0, 128
  %79 = vxpose.xlu0.b32.end [16/16] 0.0, 128
  %v80 = vpop.trf.xlu0
  %v81 = vpop.trf.xlu0
  %v82 = vpop.trf.xlu0
  %v83 = vpop.trf.xlu0
  %v84 = vpop.trf.xlu0
  %v85 = vpop.trf.xlu0
  %v86 = vpop.trf.xlu0
  %v87 = vpop.trf.xlu0
  %v88 = vpop.trf.xlu0
  %v89 = vpop.trf.xlu0
  %v90 = vpop.trf.xlu0
  %v91 = vpop.trf.xlu0
  %v92 = vpop.trf.xlu0
  %v93 = vpop.trf.xlu0
  %v94 = vpop.trf.xlu0
  %v95 = vpop.trf.xlu0
  %s96 = scalar_lea.vmem %s0, 4
  %v97 = vld [vmem:[%s96] sm:$0xf]
  %98 = vxpose.xlu0.b32.start [1/16] %v97, 128
  %99 = vxpose.xlu0.b32.cont [2/16] 0.0, 128
  %100 = vxpose.xlu0.b32.cont [3/16] 0.0, 128
  %101 = vxpose.xlu0.b32.cont [4/16] 0.0, 128
  %102 = vxpose.xlu0.b32.cont [5/16] 0.0, 128
  %103 = vxpose.xlu0.b32.cont [6/16] 0.0, 128
  %104 = vxpose.xlu0.b32.cont [7/16] 0.0, 128
  %105 = vxpose.xlu0.b32.cont [8/16] 0.0, 128
  %106 = vxpose.xlu0.b32.cont [9/16] 0.0, 128
  %107 = vxpose.xlu0.b32.cont [10/16] 0.0, 128
  %108 = vxpose.xlu0.b32.cont [11/16] 0.0, 128
  %109 = vxpose.xlu0.b32.cont [12/16] 0.0, 128
  %110 = vxpose.xlu0.b32.cont [13/16] 0.0, 128
  %111 = vxpose.xlu0.b32.cont [14/16] 0.0, 128
  %112 = vxpose.xlu0.b32.cont [15/16] 0.0, 128
  %113 = vxpose.xlu0.b32.end [16/16] 0.0, 128
  %v114 = vpop.trf.xlu0
  %v115 = vpop.trf.xlu0
  %v116 = vpop.trf.xlu0
  %v117 = vpop.trf.xlu0
  %v118 = vpop.trf.xlu0
  %v119 = vpop.trf.xlu0
  %v120 = vpop.trf.xlu0
  %v121 = vpop.trf.xlu0
  %v122 = vpop.trf.xlu0
  %v123 = vpop.trf.xlu0
  %v124 = vpop.trf.xlu0
  %v125 = vpop.trf.xlu0
  %v126 = vpop.trf.xlu0
  %v127 = vpop.trf.xlu0
  %v128 = vpop.trf.xlu0
  %v129 = vpop.trf.xlu0
  %v130 = vpack.c.bf16 %v80, %v80
  %v131 = vpack.c.bf16 %v81, %v81
  %v132 = vpack.c.bf16 %v114, %v114
  %v133 = vpack.c.bf16 %v115, %v115
  %v138 = vunpack.c.l.b16 %v130
  %v139 = vunpack.c.l.b16 %v131
  %v140 = vunpack.c.l.b16 %v132
  %v141 = vunpack.c.l.b16 %v133
  %v142 = vpack.c.b16 %v139, %v138
  %v143 = vpack.c.b16 %v141, %v140
  %v145 = vshrl.u32 %v142, 16
  %v147 = vrot.slane %v145, 7
  %v148 = vshll.u32 %v142, 16
  %v150 = vor.u32 %v147, %v148
  %v152 = vshrl.u32 %v143, 16
  %v154 = vrot.slane %v152, 7
  %v155 = vshll.u32 %v143, 16
  %v157 = vor.u32 %v154, %v155
  %vm162 = vcmask 1040384
  %vm163 = vsmask.f32 256
  %vm164 = vmand %vm162, %vm163
  %v165 = vsel %vm164, 0, %v150
  %v166 = vsel %vm164, 0, %v157
  %v167 = vsel %vm164, %v147, 0
  %v168 = vsel %vm164, %v154, 0
  %vm169 = vsmask.f32 7424
  %v171 = vshrl.u32 %v165, 16
  %v173 = vshll.u32 %v165, 16
  %v175 = vrot.slane %v173, 1
  %v176 = vor.u32 %v171, %v175
  %v178 = vshll.u32 %v167, 16
  %v180 = vrot.slane %v178, 1
  %v181 = vsel %vm169, %v176, %v180
  %v183 = vshrl.u32 %v166, 16
  %v185 = vshll.u32 %v166, 16
  %v187 = vrot.slane %v185, 1
  %v188 = vor.u32 %v183, %v187
  %v190 = vshll.u32 %v168, 16
  %v192 = vrot.slane %v190, 1
  %v193 = vsel %vm169, %v188, %v192
  %194 = vrot.lane.b32.xlu0 %v181, 4
  %v195 = vpop.permute.xlu0 %194
  %196 = vrot.lane.b32.xlu0 %v193, 4
  %v197 = vpop.permute.xlu0 %196
  %vm202 = vcmask 1046528
  %v203 = vrot.slane %v165, 1
  %v204 = vrot.slane %v167, 1
  %v205 = vsel %vm202, %v203, %v204
  %v206 = vrot.slane %v166, 1
  %v207 = vrot.slane %v168, 1
  %v208 = vsel %vm202, %v206, %v207
  %209 = vrot.lane.b32.xlu0 %v205, 8
  %v210 = vpop.permute.xlu0 %209
  %211 = vrot.lane.b32.xlu0 %v208, 8
  %v212 = vpop.permute.xlu0 %211
  %vm213 = vcmask 31744
  %v215 = vsel %vm213, %v165, %v195
  %v217 = vsel %vm213, %v166, %v197
  %vm218 = vcmask 64512
  %v220 = vsel %vm218, %v215, %v210
  %v222 = vsel %vm218, %v217, %v212
  %v223 = vld [vmem:[%s1] sm:$0xf]
  %v224 = vld [vmem:[%s1 + $0x4] sm:$0x3]
  %v227 = vunpack.c.l.b16 %v223
  %v228 = vunpack.c.l.b16 %v224
  %v229 = vpack.c.b16 %v228, %v227
  %vm230 = vcmask 97280
  %v231 = vsel %vm230, %v220, 0
  %v233 = vsel %vm230, %v222, 0
  %vm235 = vcmask 1045504
  %v237 = vsel %vm235, %v229, 0
  %239 = vmatpush.bf16.msra.mxu0 0
  %240 = vmatpush.bf16.msra.mxu0 0
  %241 = vmatpush.bf16.msra.mxu0 0
  %242 = vmatpush.bf16.msra.mxu0 0
  %243 = vmatpush.bf16.msra.mxu0 0
  %244 = vmatpush.bf16.msra.mxu0 0
  %245 = vmatpush.bf16.msra.mxu0 0
  %246 = vmatpush.bf16.msra.mxu0 %v237
  %247 = vmatmul.bf16.gmra.mxu0 %v231
  %v248 = vpop.f32.mrf.mxu0
  %v249 = vadd.f32 0.0, %v248
  %v250 = vpop.f32.mrf.mxu0
  %v251 = vadd.f32 0.0, %v250
  %252 = vmatmul.bf16.gmra.mxu0 %v233
  %v253 = vpop.f32.mrf.mxu0
  %v254 = vadd.f32 0.0, %v253
  %v255 = vpop.f32.mrf.mxu0
  %v256 = vadd.f32 0.0, %v255
  %257 = vdwg.mxu0
  %v258 = vld [vmem:[%s2] sm:$0x1]
  %v259 = vld [vmem:[%s3] sm:$0x1]
  %v260 = vsel %vm218, %v249, 0.0
  %v261 = vsel %vm218, %v251, 0.0
  %v262 = vadd.f32 %v260, %v261
  %v263 = vsel %vm218, %v254, 0.0
  %v264 = vadd.f32 %v262, %v263
  %v265 = vsel %vm218, %v256, 0.0
  %v266 = vadd.f32 %v264, %v265
  %v267 = vrot.slane %v266, 4
  %v268 = vadd.f32 %v266, %v267
  %v269 = vrot.slane %v268, 2
  %v270 = vadd.f32 %v268, %v269
  %v271 = vrot.slane %v270, 1
  %v272 = vadd.f32 %v270, %v271
  %v273 = vrcp.pop 32.0
  %v274 = vmul.f32 32.0, %v273
  %v275 = vsub.f32 1.0, %v274
  %v276 = vmul.f32 %v273, %v275
  %v277 = vadd.f32 %v273, %v276
  %vm278 = vweird.f32 %v273
  %v279 = vsel %vm278, %v273, %v277
  %v280 = vmul.f32 %v272, %v279
  %v281 = vsub.f32 %v249, %v280
  %v282 = vsub.f32 %v251, %v280
  %v283 = vsub.f32 %v254, %v280
  %v284 = vsub.f32 %v256, %v280
  %v285 = vmul.f32 %v281, %v281
  %v286 = vmul.f32 %v282, %v282
  %v287 = vmul.f32 %v283, %v283
  %v288 = vmul.f32 %v284, %v284
  %v289 = vsel %vm218, %v285, 0.0
  %v290 = vsel %vm218, %v286, 0.0
  %v291 = vadd.f32 %v289, %v290
  %v292 = vsel %vm218, %v287, 0.0
  %v293 = vadd.f32 %v291, %v292
  %v294 = vsel %vm218, %v288, 0.0
  %v295 = vadd.f32 %v293, %v294
  %v296 = vrot.slane %v295, 4
  %v297 = vadd.f32 %v295, %v296
  %v298 = vrot.slane %v297, 2
  %v299 = vadd.f32 %v297, %v298
  %v300 = vrot.slane %v299, 1
  %v301 = vadd.f32 %v299, %v300
  %v302 = vmul.f32 %v301, %v279
  %v303 = vadd.f32 %v302, 1e-05
  %v304 = vrsqrt.pop %v303
  %v305 = vmul.f32 %v304, %v303
  %v306 = vmul.f32 %v305, %v304
  %v307 = vmul.f32 0.5, %v306
  %v308 = vsub.f32 1.5, %v307
  %v309 = vmul.f32 %v304, %v308
  %vm310 = vweird.f32 %v303
  %vm311 = vweird.f32 %v304
  %vm312 = vmor %vm310, %vm311
  %v313 = vsel %vm312, %v304, %v309
  %v314 = vmul.f32 %v258, %v313
  %v316 = vperm.slane %v314, 0
  %v318 = vmul.f32 %v281, %v316
  %v319 = vmul.f32 %v282, %v316
  %v320 = vmul.f32 %v283, %v316
  %v321 = vmul.f32 %v284, %v316
  %v323 = vperm.slane %v259, 0
  %v325 = vadd.f32 %v318, %v323
  %v326 = vadd.f32 %v319, %v323
  %v327 = vadd.f32 %v320, %v323
  %v328 = vadd.f32 %v321, %v323
  %v329 = vmax.f32 %v325, 0.0
  %v330 = vmax.f32 %v326, 0.0
  %v331 = vmax.f32 %v327, 0.0
  %v332 = vmax.f32 %v328, 0.0
  %v333 = vpack.c.bf16 %v329, %v329
  %v334 = vpack.c.bf16 %v330, %v330
  %v335 = vpack.c.bf16 %v331, %v331
  %v336 = vpack.c.bf16 %v332, %v332
  %v341 = vunpack.c.l.b16 %v333
  %v342 = vunpack.c.l.b16 %v334
  %v343 = vunpack.c.l.b16 %v335
  %v344 = vunpack.c.l.b16 %v336
  %v345 = vpack.c.b16 %v342, %v341
  %v346 = vpack.c.b16 %v344, %v343
  %v348 = vshrl.u32 %v345, 16
  %v350 = vrot.slane %v348, 7
  %v351 = vshll.u32 %v345, 16
  %v353 = vor.u32 %v350, %v351
  %v355 = vshrl.u32 %v346, 16
  %v357 = vrot.slane %v355, 7
  %v358 = vshll.u32 %v346, 16
  %v360 = vor.u32 %v357, %v358
  %v365 = vsel %vm164, 0, %v353
  %v366 = vsel %vm164, 0, %v360
  %v367 = vsel %vm164, %v350, 0
  %v368 = vsel %vm164, %v357, 0
  %v370 = vshrl.u32 %v365, 16
  %v372 = vshll.u32 %v365, 16
  %v374 = vrot.slane %v372, 1
  %v375 = vor.u32 %v370, %v374
  %v377 = vshll.u32 %v367, 16
  %v379 = vrot.slane %v377, 1
  %v380 = vsel %vm169, %v375, %v379
  %v382 = vshrl.u32 %v366, 16
  %v384 = vshll.u32 %v366, 16
  %v386 = vrot.slane %v384, 1
  %v387 = vor.u32 %v382, %v386
  %v389 = vshll.u32 %v368, 16
  %v391 = vrot.slane %v389, 1
  %v392 = vsel %vm169, %v387, %v391
  %393 = vrot.lane.b32.xlu0 %v380, 8
  %v394 = vpop.permute.xlu0 %393
  %395 = vrot.lane.b32.xlu0 %v392, 8
  %v396 = vpop.permute.xlu0 %395
  %v401 = vrot.slane %v365, 1
  %v402 = vrot.slane %v367, 1
  %v403 = vsel %vm202, %v401, %v402
  %v404 = vrot.slane %v366, 1
  %v405 = vrot.slane %v368, 1
  %v406 = vsel %vm202, %v404, %v405
  %407 = vrot.lane.b32.xlu0 %v403, 16
  %v408 = vpop.permute.xlu0 %407
  %409 = vrot.lane.b32.xlu0 %v406, 16
  %v410 = vpop.permute.xlu0 %409
  %v412 = vsel %vm218, %v365, %v394
  %v414 = vsel %vm218, %v366, %v396
  %vm415 = vcmask 130048
  %v417 = vsel %vm415, %v412, %v408
  %v419 = vsel %vm415, %v414, %v410
  %420 = vrot.lane.b32.xlu0 %v142, 24
  %v421 = vpop.permute.xlu0 %420
  %422 = vrot.lane.b32.xlu0 %v143, 24
  %v423 = vpop.permute.xlu0 %422
  %vm424 = vcmask 195584
  %v426 = vsel %vm424, %v417, %v421
  %v428 = vsel %vm424, %v419, %v423
  %v429 = vld [vmem:[%s4] sm:$0xf]
  %v430 = vld [vmem:[%s4 + $0x4] sm:$0xf]
  %v431 = vld [vmem:[%s4 + $0x8] sm:$0xf]
  %v432 = vld [vmem:[%s4 + $0xc] sm:$0x3]
  %v437 = vunpack.c.l.b16 %v429
  %v438 = vunpack.c.l.b16 %v430
  %v439 = vunpack.c.l.b16 %v431
  %v440 = vunpack.c.l.b16 %v432
  %v441 = vpack.c.b16 %v438, %v437
  %v442 = vpack.c.b16 %v440, %v439
  %vm444 = vcmask 228352
  %v445 = vsel %vm444, %v426, 0
  %v447 = vsel %vm444, %v428, 0
  %v450 = vsel %vm235, %v442, 0
  %452 = vmatpush.bf16.msra.mxu0 0
  %453 = vmatpush.bf16.msra.mxu0 0
  %454 = vmatpush.bf16.msra.mxu0 0
  %455 = vmatpush.bf16.msra.mxu0 0
  %456 = vmatpush.bf16.msra.mxu0 0
  %457 = vmatpush.bf16.msra.mxu0 0
  %458 = vmatpush.bf16.msra.mxu0 %v450
  %459 = vmatpush.bf16.msra.mxu0 %v441
  %460 = vmatmul.bf16.gmra.mxu0 %v445
  %v461 = vpop.f32.mrf.mxu0
  %v462 = vadd.f32 0.0, %v461
  %v463 = vpop.f32.mrf.mxu0
  %v464 = vadd.f32 0.0, %v463
  %465 = vmatmul.bf16.gmra.mxu0 %v447
  %v466 = vpop.f32.mrf.mxu0
  %v467 = vadd.f32 0.0, %v466
  %v468 = vpop.f32.mrf.mxu0
  %v469 = vadd.f32 0.0, %v468
  %470 = vdwg.mxu0
  %v471 = vld [vmem:[%s5] sm:$0x1]
  %v472 = vld [vmem:[%s6] sm:$0x1]
  %v473 = vsel %vm218, %v462, 0.0
  %v474 = vsel %vm218, %v464, 0.0
  %v475 = vadd.f32 %v473, %v474
  %v476 = vsel %vm218, %v467, 0.0
  %v477 = vadd.f32 %v475, %v476
  %v478 = vsel %vm218, %v469, 0.0
  %v479 = vadd.f32 %v477, %v478
  %v480 = vrot.slane %v479, 4
  %v481 = vadd.f32 %v479, %v480
  %v482 = vrot.slane %v481, 2
  %v483 = vadd.f32 %v481, %v482
  %v484 = vrot.slane %v483, 1
  %v485 = vadd.f32 %v483, %v484
  %v486 = vmul.f32 %v485, %v279
  %v487 = vsub.f32 %v462, %v486
  %v488 = vsub.f32 %v464, %v486
  %v489 = vsub.f32 %v467, %v486
  %v490 = vsub.f32 %v469, %v486
  %v491 = vmul.f32 %v487, %v487
  %v492 = vmul.f32 %v488, %v488
  %v493 = vmul.f32 %v489, %v489
  %v494 = vmul.f32 %v490, %v490
  %v495 = vsel %vm218, %v491, 0.0
  %v496 = vsel %vm218, %v492, 0.0
  %v497 = vadd.f32 %v495, %v496
  %v498 = vsel %vm218, %v493, 0.0
  %v499 = vadd.f32 %v497, %v498
  %v500 = vsel %vm218, %v494, 0.0
  %v501 = vadd.f32 %v499, %v500
  %v502 = vrot.slane %v501, 4
  %v503 = vadd.f32 %v501, %v502
  %v504 = vrot.slane %v503, 2
  %v505 = vadd.f32 %v503, %v504
  %v506 = vrot.slane %v505, 1
  %v507 = vadd.f32 %v505, %v506
  %v508 = vmul.f32 %v507, %v279
  %v509 = vadd.f32 %v508, 1e-05
  %v510 = vrsqrt.pop %v509
  %v511 = vmul.f32 %v510, %v509
  %v512 = vmul.f32 %v511, %v510
  %v513 = vmul.f32 0.5, %v512
  %v514 = vsub.f32 1.5, %v513
  %v515 = vmul.f32 %v510, %v514
  %vm516 = vweird.f32 %v509
  %vm517 = vweird.f32 %v510
  %vm518 = vmor %vm516, %vm517
  %v519 = vsel %vm518, %v510, %v515
  %v520 = vmul.f32 %v471, %v519
  %v522 = vperm.slane %v520, 0
  %v524 = vmul.f32 %v487, %v522
  %v525 = vmul.f32 %v488, %v522
  %v526 = vmul.f32 %v489, %v522
  %v527 = vmul.f32 %v490, %v522
  %v529 = vperm.slane %v472, 0
  %v531 = vadd.f32 %v524, %v529
  %v532 = vadd.f32 %v525, %v529
  %v533 = vadd.f32 %v526, %v529
  %v534 = vadd.f32 %v527, %v529
  %v535 = vmax.f32 %v531, 0.0
  %v536 = vmax.f32 %v532, 0.0
  %v537 = vmax.f32 %v533, 0.0
  %v538 = vmax.f32 %v534, 0.0
  %v539 = vpack.c.bf16 %v535, %v535
  %v540 = vpack.c.bf16 %v536, %v536
  %v541 = vpack.c.bf16 %v537, %v537
  %v542 = vpack.c.bf16 %v538, %v538
  %v547 = vunpack.c.l.b16 %v539
  %v548 = vunpack.c.l.b16 %v540
  %v549 = vunpack.c.l.b16 %v541
  %v550 = vunpack.c.l.b16 %v542
  %v551 = vpack.c.b16 %v548, %v547
  %v552 = vpack.c.b16 %v550, %v549
  %v554 = vshrl.u32 %v551, 16
  %v556 = vrot.slane %v554, 7
  %v557 = vshll.u32 %v551, 16
  %v559 = vor.u32 %v556, %v557
  %v561 = vshrl.u32 %v552, 16
  %v563 = vrot.slane %v561, 7
  %v564 = vshll.u32 %v552, 16
  %v566 = vor.u32 %v563, %v564
  %v571 = vsel %vm164, 0, %v559
  %v572 = vsel %vm164, 0, %v566
  %v573 = vsel %vm164, %v556, 0
  %v574 = vsel %vm164, %v563, 0
  %v576 = vshrl.u32 %v571, 16
  %v578 = vshll.u32 %v571, 16
  %v580 = vrot.slane %v578, 1
  %v581 = vor.u32 %v576, %v580
  %v583 = vshll.u32 %v573, 16
  %v585 = vrot.slane %v583, 1
  %v586 = vsel %vm169, %v581, %v585
  %v588 = vshrl.u32 %v572, 16
  %v590 = vshll.u32 %v572, 16
  %v592 = vrot.slane %v590, 1
  %v593 = vor.u32 %v588, %v592
  %v595 = vshll.u32 %v574, 16
  %v597 = vrot.slane %v595, 1
  %v598 = vsel %vm169, %v593, %v597
  %599 = vrot.lane.b32.xlu0 %v586, 8
  %v600 = vpop.permute.xlu0 %599
  %601 = vrot.lane.b32.xlu0 %v598, 8
  %v602 = vpop.permute.xlu0 %601
  %v607 = vrot.slane %v571, 1
  %v608 = vrot.slane %v573, 1
  %v609 = vsel %vm202, %v607, %v608
  %v610 = vrot.slane %v572, 1
  %v611 = vrot.slane %v574, 1
  %v612 = vsel %vm202, %v610, %v611
  %613 = vrot.lane.b32.xlu0 %v609, 16
  %v614 = vpop.permute.xlu0 %613
  %615 = vrot.lane.b32.xlu0 %v612, 16
  %v616 = vpop.permute.xlu0 %615
  %v618 = vsel %vm218, %v571, %v600
  %v620 = vsel %vm218, %v572, %v602
  %v622 = vsel %vm415, %v618, %v614
  %v624 = vsel %vm415, %v620, %v616
  %v625 = vld [vmem:[%s7] sm:$0xf]
  %v626 = vld [vmem:[%s7 + $0x4] sm:$0xf]
  %v627 = vld [vmem:[%s7 + $0x8] sm:$0xf]
  %v631 = vunpack.c.l.b16 %v625
  %v632 = vunpack.c.l.b16 %v626
  %v633 = vunpack.c.l.b16 %v627
  %v634 = vpack.c.b16 %v632, %v631
  %v635 = vpack.c.b16 %v633, %v633
  %v637 = vsel %vm424, %v622, 0
  %v639 = vsel %vm424, %v624, 0
  %vm641 = vcmask 1043456
  %v643 = vsel %vm641, %v635, 0
  %645 = vmatpush.bf16.msra.mxu0 0
  %646 = vmatpush.bf16.msra.mxu0 0
  %647 = vmatpush.bf16.msra.mxu0 0
  %648 = vmatpush.bf16.msra.mxu0 0
  %649 = vmatpush.bf16.msra.mxu0 0
  %650 = vmatpush.bf16.msra.mxu0 0
  %651 = vmatpush.bf16.msra.mxu0 %v643
  %652 = vmatpush.bf16.msra.mxu0 %v634
  %653 = vmatmul.bf16.gmra.mxu0 %v637
  %v654 = vpop.f32.mrf.mxu0
  %v655 = vadd.f32 0.0, %v654
  %v656 = vpop.f32.mrf.mxu0
  %v657 = vadd.f32 0.0, %v656
  %658 = vmatmul.bf16.gmra.mxu0 %v639
  %v659 = vpop.f32.mrf.mxu0
  %v660 = vadd.f32 0.0, %v659
  %v661 = vpop.f32.mrf.mxu0
  %v662 = vadd.f32 0.0, %v661
  %663 = vdwg.mxu0
  %v664 = vld [vmem:[%s8] sm:$0x1]
  %v665 = vld [vmem:[%s9] sm:$0x1]
  %v666 = vsel %vm415, %v655, 0.0
  %v667 = vsel %vm415, %v657, 0.0
  %v668 = vadd.f32 %v666, %v667
  %v669 = vsel %vm415, %v660, 0.0
  %v670 = vadd.f32 %v668, %v669
  %v671 = vsel %vm415, %v662, 0.0
  %v672 = vadd.f32 %v670, %v671
  %v673 = vrot.slane %v672, 4
  %v674 = vadd.f32 %v672, %v673
  %v675 = vrot.slane %v674, 2
  %v676 = vadd.f32 %v674, %v675
  %v677 = vrot.slane %v676, 1
  %v678 = vadd.f32 %v676, %v677
  %v679 = vmul.f32 %v678, %v279
  %v680 = vsub.f32 %v655, %v679
  %v681 = vsub.f32 %v657, %v679
  %v682 = vsub.f32 %v660, %v679
  %v683 = vsub.f32 %v662, %v679
  %v684 = vmul.f32 %v680, %v680
  %v685 = vmul.f32 %v681, %v681
  %v686 = vmul.f32 %v682, %v682
  %v687 = vmul.f32 %v683, %v683
  %v688 = vsel %vm415, %v684, 0.0
  %v689 = vsel %vm415, %v685, 0.0
  %v690 = vadd.f32 %v688, %v689
  %v691 = vsel %vm415, %v686, 0.0
  %v692 = vadd.f32 %v690, %v691
  %v693 = vsel %vm415, %v687, 0.0
  %v694 = vadd.f32 %v692, %v693
  %v695 = vrot.slane %v694, 4
  %v696 = vadd.f32 %v694, %v695
  %v697 = vrot.slane %v696, 2
  %v698 = vadd.f32 %v696, %v697
  %v699 = vrot.slane %v698, 1
  %v700 = vadd.f32 %v698, %v699
  %v701 = vmul.f32 %v700, %v279
  %v702 = vadd.f32 %v701, 1e-05
  %v703 = vrsqrt.pop %v702
  %v704 = vmul.f32 %v703, %v702
  %v705 = vmul.f32 %v704, %v703
  %v706 = vmul.f32 0.5, %v705
  %v707 = vsub.f32 1.5, %v706
  %v708 = vmul.f32 %v703, %v707
  %vm709 = vweird.f32 %v702
  %vm710 = vweird.f32 %v703
  %vm711 = vmor %vm709, %vm710
  %v712 = vsel %vm711, %v703, %v708
  %v713 = vmul.f32 %v664, %v712
  %v715 = vperm.slane %v713, 0
  %v717 = vmul.f32 %v680, %v715
  %v718 = vmul.f32 %v681, %v715
  %v719 = vmul.f32 %v682, %v715
  %v720 = vmul.f32 %v683, %v715
  %v722 = vperm.slane %v665, 0
  %v724 = vadd.f32 %v717, %v722
  %v725 = vadd.f32 %v718, %v722
  %v726 = vadd.f32 %v719, %v722
  %v727 = vadd.f32 %v720, %v722
  %v728 = vmax.f32 %v724, 0.0
  %v729 = vmax.f32 %v725, 0.0
  %v730 = vmax.f32 %v726, 0.0
  %v731 = vmax.f32 %v727, 0.0
  %v732 = vpack.c.bf16 %v728, %v728
  %v733 = vpack.c.bf16 %v729, %v729
  %v734 = vpack.c.bf16 %v730, %v730
  %v735 = vpack.c.bf16 %v731, %v731
  %v740 = vunpack.c.l.b16 %v732
  %v741 = vunpack.c.l.b16 %v733
  %v742 = vunpack.c.l.b16 %v734
  %v743 = vunpack.c.l.b16 %v735
  %v744 = vpack.c.b16 %v741, %v740
  %v745 = vpack.c.b16 %v743, %v742
  %v747 = vshrl.u32 %v744, 16
  %v749 = vrot.slane %v747, 7
  %v750 = vshll.u32 %v744, 16
  %v752 = vor.u32 %v749, %v750
  %v754 = vshrl.u32 %v745, 16
  %v756 = vrot.slane %v754, 7
  %v757 = vshll.u32 %v745, 16
  %v759 = vor.u32 %v756, %v757
  %v764 = vsel %vm164, 0, %v752
  %v765 = vsel %vm164, 0, %v759
  %v766 = vsel %vm164, %v749, 0
  %v767 = vsel %vm164, %v756, 0
  %v769 = vshrl.u32 %v764, 16
  %v771 = vshll.u32 %v764, 16
  %v773 = vrot.slane %v771, 1
  %v774 = vor.u32 %v769, %v773
  %v776 = vshll.u32 %v766, 16
  %v778 = vrot.slane %v776, 1
  %v779 = vsel %vm169, %v774, %v778
  %v781 = vshrl.u32 %v765, 16
  %v783 = vshll.u32 %v765, 16
  %v785 = vrot.slane %v783, 1
  %v786 = vor.u32 %v781, %v785
  %v788 = vshll.u32 %v767, 16
  %v790 = vrot.slane %v788, 1
  %v791 = vsel %vm169, %v786, %v790
  %792 = vrot.lane.b32.xlu0 %v779, 16
  %v793 = vpop.permute.xlu0 %792
  %794 = vrot.lane.b32.xlu0 %v791, 16
  %v795 = vpop.permute.xlu0 %794
  %v800 = vrot.slane %v764, 1
  %v801 = vrot.slane %v766, 1
  %v802 = vsel %vm202, %v800, %v801
  %v803 = vrot.slane %v765, 1
  %v804 = vrot.slane %v767, 1
  %v805 = vsel %vm202, %v803, %v804
  %806 = vrot.lane.b32.xlu0 %v802, 32
  %v807 = vpop.permute.xlu0 %806
  %808 = vrot.lane.b32.xlu0 %v805, 32
  %v809 = vpop.permute.xlu0 %808
  %v811 = vsel %vm415, %v764, %v793
  %v813 = vsel %vm415, %v765, %v795
  %vm814 = vcmask 261120
  %v816 = vsel %vm814, %v811, %v807
  %v818 = vsel %vm814, %v813, %v809
  %819 = vrot.lane.b32.xlu0 %v551, 48
  %v820 = vpop.permute.xlu0 %819
  %821 = vrot.lane.b32.xlu0 %v552, 48
  %v822 = vpop.permute.xlu0 %821
  %vm823 = vcmask 392192
  %v825 = vsel %vm823, %v816, %v820
  %v827 = vsel %vm823, %v818, %v822
  %v828 = vld [vmem:[%s10] sm:$0xf]
  %v829 = vld [vmem:[%s10 + $0x4] sm:$0xf]
  %v830 = vld [vmem:[%s10 + $0x8] sm:$0xf]
  %v831 = vld [vmem:[%s10 + $0xc] sm:$0xf]
  %v832 = vld [vmem:[%s10 + $0x10] sm:$0xf]
  %v833 = vld [vmem:[%s10 + $0x14] sm:$0xf]
  %v834 = vld [vmem:[%s10 + $0x18] sm:$0xf]
  %v842 = vunpack.c.l.b16 %v828
  %v843 = vunpack.c.l.b16 %v829
  %v844 = vunpack.c.l.b16 %v830
  %v845 = vunpack.c.l.b16 %v831
  %v846 = vunpack.c.l.b16 %v832
  %v847 = vunpack.c.l.b16 %v833
  %v848 = vunpack.c.l.b16 %v834
  %v849 = vpack.c.b16 %v843, %v842
  %v850 = vpack.c.b16 %v845, %v844
  %v851 = vpack.c.b16 %v847, %v846
  %v852 = vpack.c.b16 %v848, %v848
  %vm856 = vcmask 457728
  %v857 = vsel %vm856, %v825, 0
  %v859 = vsel %vm856, %v827, 0
  %v862 = vsel %vm641, %v852, 0
  %864 = vmatpush.bf16.msra.mxu0 0
  %865 = vmatpush.bf16.msra.mxu0 0
  %866 = vmatpush.bf16.msra.mxu0 0
  %867 = vmatpush.bf16.msra.mxu0 0
  %868 = vmatpush.bf16.msra.mxu0 %v862
  %869 = vmatpush.bf16.msra.mxu0 %v851
  %870 = vmatpush.bf16.msra.mxu0 %v850
  %871 = vmatpush.bf16.msra.mxu0 %v849
  %872 = vmatmul.bf16.gmra.mxu0 %v857
  %v873 = vpop.f32.mrf.mxu0
  %v874 = vadd.f32 0.0, %v873
  %v875 = vpop.f32.mrf.mxu0
  %v876 = vadd.f32 0.0, %v875
  %877 = vmatmul.bf16.gmra.mxu0 %v859
  %v878 = vpop.f32.mrf.mxu0
  %v879 = vadd.f32 0.0, %v878
  %v880 = vpop.f32.mrf.mxu0
  %v881 = vadd.f32 0.0, %v880
  %882 = vdwg.mxu0
  %v883 = vld [vmem:[%s11] sm:$0x1]
  %v884 = vld [vmem:[%s12] sm:$0x1]
  %v885 = vsel %vm415, %v874, 0.0
  %v886 = vsel %vm415, %v876, 0.0
  %v887 = vadd.f32 %v885, %v886
  %v888 = vsel %vm415, %v879, 0.0
  %v889 = vadd.f32 %v887, %v888
  %v890 = vsel %vm415, %v881, 0.0
  %v891 = vadd.f32 %v889, %v890
  %v892 = vrot.slane %v891, 4
  %v893 = vadd.f32 %v891, %v892
  %v894 = vrot.slane %v893, 2
  %v895 = vadd.f32 %v893, %v894
  %v896 = vrot.slane %v895, 1
  %v897 = vadd.f32 %v895, %v896
  %v898 = vmul.f32 %v897, %v279
  %v899 = vsub.f32 %v874, %v898
  %v900 = vsub.f32 %v876, %v898
  %v901 = vsub.f32 %v879, %v898
  %v902 = vsub.f32 %v881, %v898
  %v903 = vmul.f32 %v899, %v899
  %v904 = vmul.f32 %v900, %v900
  %v905 = vmul.f32 %v901, %v901
  %v906 = vmul.f32 %v902, %v902
  %v907 = vsel %vm415, %v903, 0.0
  %v908 = vsel %vm415, %v904, 0.0
  %v909 = vadd.f32 %v907, %v908
  %v910 = vsel %vm415, %v905, 0.0
  %v911 = vadd.f32 %v909, %v910
  %v912 = vsel %vm415, %v906, 0.0
  %v913 = vadd.f32 %v911, %v912
  %v914 = vrot.slane %v913, 4
  %v915 = vadd.f32 %v913, %v914
  %v916 = vrot.slane %v915, 2
  %v917 = vadd.f32 %v915, %v916
  %v918 = vrot.slane %v917, 1
  %v919 = vadd.f32 %v917, %v918
  %v920 = vmul.f32 %v919, %v279
  %v921 = vadd.f32 %v920, 1e-05
  %v922 = vrsqrt.pop %v921
  %v923 = vmul.f32 %v922, %v921
  %v924 = vmul.f32 %v923, %v922
  %v925 = vmul.f32 0.5, %v924
  %v926 = vsub.f32 1.5, %v925
  %v927 = vmul.f32 %v922, %v926
  %vm928 = vweird.f32 %v921
  %vm929 = vweird.f32 %v922
  %vm930 = vmor %vm928, %vm929
  %v931 = vsel %vm930, %v922, %v927
  %v932 = vmul.f32 %v883, %v931
  %v934 = vperm.slane %v932, 0
  %v936 = vmul.f32 %v899, %v934
  %v937 = vmul.f32 %v900, %v934
  %v938 = vmul.f32 %v901, %v934
  %v939 = vmul.f32 %v902, %v934
  %v941 = vperm.slane %v884, 0
  %v943 = vadd.f32 %v936, %v941
  %v944 = vadd.f32 %v937, %v941
  %v945 = vadd.f32 %v938, %v941
  %v946 = vadd.f32 %v939, %v941
  %v947 = vmax.f32 %v943, 0.0
  %v948 = vmax.f32 %v944, 0.0
  %v949 = vmax.f32 %v945, 0.0
  %v950 = vmax.f32 %v946, 0.0
  %v951 = vpack.c.bf16 %v947, %v947
  %v952 = vpack.c.bf16 %v948, %v948
  %v953 = vpack.c.bf16 %v949, %v949
  %v954 = vpack.c.bf16 %v950, %v950
  %v959 = vunpack.c.l.b16 %v951
  %v960 = vunpack.c.l.b16 %v952
  %v961 = vunpack.c.l.b16 %v953
  %v962 = vunpack.c.l.b16 %v954
  %v963 = vpack.c.b16 %v960, %v959
  %v964 = vpack.c.b16 %v962, %v961
  %v966 = vshrl.u32 %v963, 16
  %v968 = vrot.slane %v966, 7
  %v969 = vshll.u32 %v963, 16
  %v971 = vor.u32 %v968, %v969
  %v973 = vshrl.u32 %v964, 16
  %v975 = vrot.slane %v973, 7
  %v976 = vshll.u32 %v964, 16
  %v978 = vor.u32 %v975, %v976
  %v983 = vsel %vm164, 0, %v971
  %v984 = vsel %vm164, 0, %v978
  %v985 = vsel %vm164, %v968, 0
  %v986 = vsel %vm164, %v975, 0
  %v988 = vshrl.u32 %v983, 16
  %v990 = vshll.u32 %v983, 16
  %v992 = vrot.slane %v990, 1
  %v993 = vor.u32 %v988, %v992
  %v995 = vshll.u32 %v985, 16
  %v997 = vrot.slane %v995, 1
  %v998 = vsel %vm169, %v993, %v997
  %v1000 = vshrl.u32 %v984, 16
  %v1002 = vshll.u32 %v984, 16
  %v1004 = vrot.slane %v1002, 1
  %v1005 = vor.u32 %v1000, %v1004
  %v1007 = vshll.u32 %v986, 16
  %v1009 = vrot.slane %v1007, 1
  %v1010 = vsel %vm169, %v1005, %v1009
  %1011 = vrot.lane.b32.xlu0 %v998, 16
  %v1012 = vpop.permute.xlu0 %1011
  %1013 = vrot.lane.b32.xlu0 %v1010, 16
  %v1014 = vpop.permute.xlu0 %1013
  %v1019 = vrot.slane %v983, 1
  %v1020 = vrot.slane %v985, 1
  %v1021 = vsel %vm202, %v1019, %v1020
  %v1022 = vrot.slane %v984, 1
  %v1023 = vrot.slane %v986, 1
  %v1024 = vsel %vm202, %v1022, %v1023
  %1025 = vrot.lane.b32.xlu0 %v1021, 32
  %v1026 = vpop.permute.xlu0 %1025
  %1027 = vrot.lane.b32.xlu0 %v1024, 32
  %v1028 = vpop.permute.xlu0 %1027
  %v1030 = vsel %vm415, %v983, %v1012
  %v1032 = vsel %vm415, %v984, %v1014
  %v1034 = vsel %vm814, %v1030, %v1026
  %v1036 = vsel %vm814, %v1032, %v1028
  %v1037 = vld [vmem:[%s13] sm:$0xf]
  %v1038 = vld [vmem:[%s13 + $0x4] sm:$0xf]
  %v1039 = vld [vmem:[%s13 + $0x8] sm:$0xf]
  %v1040 = vld [vmem:[%s13 + $0xc] sm:$0xf]
  %v1041 = vld [vmem:[%s13 + $0x10] sm:$0xf]
  %v1042 = vld [vmem:[%s13 + $0x14] sm:$0xf]
  %v1049 = vunpack.c.l.b16 %v1037
  %v1050 = vunpack.c.l.b16 %v1038
  %v1051 = vunpack.c.l.b16 %v1039
  %v1052 = vunpack.c.l.b16 %v1040
  %v1053 = vunpack.c.l.b16 %v1041
  %v1054 = vunpack.c.l.b16 %v1042
  %v1055 = vpack.c.b16 %v1050, %v1049
  %v1056 = vpack.c.b16 %v1052, %v1051
  %v1057 = vpack.c.b16 %v1054, %v1053
  %v1061 = vsel %vm823, %v1034, 0
  %v1063 = vsel %vm823, %v1036, 0
  %1065 = vmatpush.bf16.msra.mxu0 0
  %1066 = vmatpush.bf16.msra.mxu0 0
  %1067 = vmatpush.bf16.msra.mxu0 0
  %1068 = vmatpush.bf16.msra.mxu0 0
  %1069 = vmatpush.bf16.msra.mxu0 0
  %1070 = vmatpush.bf16.msra.mxu0 %v1057
  %1071 = vmatpush.bf16.msra.mxu0 %v1056
  %1072 = vmatpush.bf16.msra.mxu0 %v1055
  %1073 = vmatmul.bf16.gmra.mxu0 %v1061
  %v1074 = vpop.f32.mrf.mxu0
  %v1075 = vadd.f32 0.0, %v1074
  %v1076 = vpop.f32.mrf.mxu0
  %v1077 = vadd.f32 0.0, %v1076
  %1078 = vmatmul.bf16.gmra.mxu0 %v1063
  %v1079 = vpop.f32.mrf.mxu0
  %v1080 = vadd.f32 0.0, %v1079
  %v1081 = vpop.f32.mrf.mxu0
  %v1082 = vadd.f32 0.0, %v1081
  %1083 = vdwg.mxu0
  %v1084 = vld [vmem:[%s14] sm:$0x1]
  %v1085 = vld [vmem:[%s15] sm:$0x1]
  %v1086 = vsel %vm814, %v1075, 0.0
  %v1087 = vsel %vm814, %v1077, 0.0
  %v1088 = vadd.f32 %v1086, %v1087
  %v1089 = vsel %vm814, %v1080, 0.0
  %v1090 = vadd.f32 %v1088, %v1089
  %v1091 = vsel %vm814, %v1082, 0.0
  %v1092 = vadd.f32 %v1090, %v1091
  %v1093 = vrot.slane %v1092, 4
  %v1094 = vadd.f32 %v1092, %v1093
  %v1095 = vrot.slane %v1094, 2
  %v1096 = vadd.f32 %v1094, %v1095
  %v1097 = vrot.slane %v1096, 1
  %v1098 = vadd.f32 %v1096, %v1097
  %v1099 = vmul.f32 %v1098, %v279
  %v1100 = vsub.f32 %v1075, %v1099
  %v1101 = vsub.f32 %v1077, %v1099
  %v1102 = vsub.f32 %v1080, %v1099
  %v1103 = vsub.f32 %v1082, %v1099
  %v1104 = vmul.f32 %v1100, %v1100
  %v1105 = vmul.f32 %v1101, %v1101
  %v1106 = vmul.f32 %v1102, %v1102
  %v1107 = vmul.f32 %v1103, %v1103
  %v1108 = vsel %vm814, %v1104, 0.0
  %v1109 = vsel %vm814, %v1105, 0.0
  %v1110 = vadd.f32 %v1108, %v1109
  %v1111 = vsel %vm814, %v1106, 0.0
  %v1112 = vadd.f32 %v1110, %v1111
  %v1113 = vsel %vm814, %v1107, 0.0
  %v1114 = vadd.f32 %v1112, %v1113
  %v1115 = vrot.slane %v1114, 4
  %v1116 = vadd.f32 %v1114, %v1115
  %v1117 = vrot.slane %v1116, 2
  %v1118 = vadd.f32 %v1116, %v1117
  %v1119 = vrot.slane %v1118, 1
  %v1120 = vadd.f32 %v1118, %v1119
  %v1121 = vmul.f32 %v1120, %v279
  %v1122 = vadd.f32 %v1121, 1e-05
  %v1123 = vrsqrt.pop %v1122
  %v1124 = vmul.f32 %v1123, %v1122
  %v1125 = vmul.f32 %v1124, %v1123
  %v1126 = vmul.f32 0.5, %v1125
  %v1127 = vsub.f32 1.5, %v1126
  %v1128 = vmul.f32 %v1123, %v1127
  %vm1129 = vweird.f32 %v1122
  %vm1130 = vweird.f32 %v1123
  %vm1131 = vmor %vm1129, %vm1130
  %v1132 = vsel %vm1131, %v1123, %v1128
  %v1133 = vmul.f32 %v1084, %v1132
  %v1135 = vperm.slane %v1133, 0
  %v1137 = vmul.f32 %v1100, %v1135
  %v1138 = vmul.f32 %v1101, %v1135
  %v1139 = vmul.f32 %v1102, %v1135
  %v1140 = vmul.f32 %v1103, %v1135
  %v1142 = vperm.slane %v1085, 0
  %v1144 = vadd.f32 %v1137, %v1142
  %v1145 = vadd.f32 %v1138, %v1142
  %v1146 = vadd.f32 %v1139, %v1142
  %v1147 = vadd.f32 %v1140, %v1142
  %v1148 = vmax.f32 %v1144, 0.0
  %v1149 = vmax.f32 %v1145, 0.0
  %v1150 = vmax.f32 %v1146, 0.0
  %v1151 = vmax.f32 %v1147, 0.0
  %v1152 = vpack.c.bf16 %v1148, %v1148
  %v1153 = vpack.c.bf16 %v1149, %v1149
  %v1154 = vpack.c.bf16 %v1150, %v1150
  %v1155 = vpack.c.bf16 %v1151, %v1151
  %v1160 = vunpack.c.l.b16 %v1152
  %v1161 = vunpack.c.l.b16 %v1153
  %v1162 = vunpack.c.l.b16 %v1154
  %v1163 = vunpack.c.l.b16 %v1155
  %v1164 = vpack.c.b16 %v1161, %v1160
  %v1165 = vpack.c.b16 %v1163, %v1162
  %v1167 = vshrl.u32 %v1164, 16
  %v1169 = vrot.slane %v1167, 7
  %v1170 = vshll.u32 %v1164, 16
  %v1172 = vor.u32 %v1169, %v1170
  %v1174 = vshrl.u32 %v1165, 16
  %v1176 = vrot.slane %v1174, 7
  %v1177 = vshll.u32 %v1165, 16
  %v1179 = vor.u32 %v1176, %v1177
  %v1184 = vsel %vm164, 0, %v1172
  %v1185 = vsel %vm164, 0, %v1179
  %v1186 = vsel %vm164, %v1169, 0
  %v1187 = vsel %vm164, %v1176, 0
  %v1189 = vshrl.u32 %v1184, 16
  %v1191 = vshll.u32 %v1184, 16
  %v1193 = vrot.slane %v1191, 1
  %v1194 = vor.u32 %v1189, %v1193
  %v1196 = vshll.u32 %v1186, 16
  %v1198 = vrot.slane %v1196, 1
  %v1199 = vsel %vm169, %v1194, %v1198
  %v1201 = vshrl.u32 %v1185, 16
  %v1203 = vshll.u32 %v1185, 16
  %v1205 = vrot.slane %v1203, 1
  %v1206 = vor.u32 %v1201, %v1205
  %v1208 = vshll.u32 %v1187, 16
  %v1210 = vrot.slane %v1208, 1
  %v1211 = vsel %vm169, %v1206, %v1210
  %1212 = vrot.lane.b32.xlu0 %v1199, 32
  %v1213 = vpop.permute.xlu0 %1212
  %1214 = vrot.lane.b32.xlu0 %v1211, 32
  %v1215 = vpop.permute.xlu0 %1214
  %v1220 = vrot.slane %v1184, 1
  %v1221 = vrot.slane %v1186, 1
  %v1222 = vsel %vm202, %v1220, %v1221
  %v1223 = vrot.slane %v1185, 1
  %v1224 = vrot.slane %v1187, 1
  %v1225 = vsel %vm202, %v1223, %v1224
  %1226 = vrot.lane.b32.xlu0 %v1222, 64
  %v1227 = vpop.permute.xlu0 %1226
  %1228 = vrot.lane.b32.xlu0 %v1225, 64
  %v1229 = vpop.permute.xlu0 %1228
  %v1231 = vsel %vm814, %v1184, %v1213
  %v1233 = vsel %vm814, %v1185, %v1215
  %vm1234 = vcmask 523264
  %v1236 = vsel %vm1234, %v1231, %v1227
  %v1238 = vsel %vm1234, %v1233, %v1229
  %1239 = vrot.lane.b32.xlu0 %v963, 96
  %v1240 = vpop.permute.xlu0 %1239
  %1241 = vrot.lane.b32.xlu0 %v964, 96
  %v1242 = vpop.permute.xlu0 %1241
  %vm1243 = vcmask 785408
  %v1245 = vsel %vm1243, %v1236, %v1240
  %v1247 = vsel %vm1243, %v1238, %v1242
  %v1248 = vld [vmem:[%s16] sm:$0xf]
  %v1249 = vld [vmem:[%s16 + $0x4] sm:$0xf]
  %v1250 = vld [vmem:[%s16 + $0x8] sm:$0xf]
  %v1251 = vld [vmem:[%s16 + $0xc] sm:$0xf]
  %v1252 = vld [vmem:[%s16 + $0x10] sm:$0xf]
  %v1253 = vld [vmem:[%s16 + $0x14] sm:$0xf]
  %v1254 = vld [vmem:[%s16 + $0x18] sm:$0xf]
  %v1255 = vld [vmem:[%s16 + $0x1c] sm:$0xf]
  %v1256 = vld [vmem:[%s16 + $0x20] sm:$0xf]
  %v1257 = vld [vmem:[%s16 + $0x24] sm:$0xf]
  %v1258 = vld [vmem:[%s16 + $0x28] sm:$0xf]
  %v1259 = vld [vmem:[%s16 + $0x2c] sm:$0xf]
  %v1260 = vld [vmem:[%s16 + $0x30] sm:$0xf]
  %v1261 = vld [vmem:[%s16 + $0x34] sm:$0xf]
  %v1276 = vunpack.c.l.b16 %v1248
  %v1277 = vunpack.c.l.b16 %v1249
  %v1278 = vunpack.c.l.b16 %v1250
  %v1279 = vunpack.c.l.b16 %v1251
  %v1280 = vunpack.c.l.b16 %v1252
  %v1281 = vunpack.c.l.b16 %v1253
  %v1282 = vunpack.c.l.b16 %v1254
  %v1283 = vunpack.c.l.b16 %v1255
  %v1284 = vunpack.c.l.b16 %v1256
  %v1285 = vunpack.c.l.b16 %v1257
  %v1286 = vunpack.c.l.b16 %v1258
  %v1287 = vunpack.c.l.b16 %v1259
  %v1288 = vunpack.c.l.b16 %v1260
  %v1289 = vunpack.c.l.b16 %v1261
  %v1290 = vpack.c.b16 %v1277, %v1276
  %v1291 = vpack.c.b16 %v1279, %v1278
  %v1292 = vpack.c.b16 %v1281, %v1280
  %v1293 = vpack.c.b16 %v1283, %v1282
  %v1294 = vpack.c.b16 %v1285, %v1284
  %v1295 = vpack.c.b16 %v1287, %v1286
  %v1296 = vpack.c.b16 %v1289, %v1288
  %vm1304 = vcmask 916480
  %v1305 = vsel %vm1304, %v1245, 0
  %v1307 = vsel %vm1304, %v1247, 0
  %1309 = vmatpush.bf16.msra.mxu0 0
  %1310 = vmatpush.bf16.msra.mxu0 %v1296
  %1311 = vmatpush.bf16.msra.mxu0 %v1295
  %1312 = vmatpush.bf16.msra.mxu0 %v1294
  %1313 = vmatpush.bf16.msra.mxu0 %v1293
  %1314 = vmatpush.bf16.msra.mxu0 %v1292
  %1315 = vmatpush.bf16.msra.mxu0 %v1291
  %1316 = vmatpush.bf16.msra.mxu0 %v1290
  %1317 = vmatmul.bf16.gmra.mxu0 %v1305
  %v1318 = vpop.f32.mrf.mxu0
  %v1319 = vadd.f32 0.0, %v1318
  %v1320 = vpop.f32.mrf.mxu0
  %v1321 = vadd.f32 0.0, %v1320
  %1322 = vmatmul.bf16.gmra.mxu0 %v1307
  %v1323 = vpop.f32.mrf.mxu0
  %v1324 = vadd.f32 0.0, %v1323
  %v1325 = vpop.f32.mrf.mxu0
  %v1326 = vadd.f32 0.0, %v1325
  %1327 = vdwg.mxu0
  %v1328 = vld [vmem:[%s17] sm:$0x1]
  %v1329 = vld [vmem:[%s18] sm:$0x1]
  %v1330 = vsel %vm814, %v1319, 0.0
  %v1331 = vsel %vm814, %v1321, 0.0
  %v1332 = vadd.f32 %v1330, %v1331
  %v1333 = vsel %vm814, %v1324, 0.0
  %v1334 = vadd.f32 %v1332, %v1333
  %v1335 = vsel %vm814, %v1326, 0.0
  %v1336 = vadd.f32 %v1334, %v1335
  %v1337 = vrot.slane %v1336, 4
  %v1338 = vadd.f32 %v1336, %v1337
  %v1339 = vrot.slane %v1338, 2
  %v1340 = vadd.f32 %v1338, %v1339
  %v1341 = vrot.slane %v1340, 1
  %v1342 = vadd.f32 %v1340, %v1341
  %v1343 = vmul.f32 %v1342, %v279
  %v1344 = vsub.f32 %v1319, %v1343
  %v1345 = vsub.f32 %v1321, %v1343
  %v1346 = vsub.f32 %v1324, %v1343
  %v1347 = vsub.f32 %v1326, %v1343
  %v1348 = vmul.f32 %v1344, %v1344
  %v1349 = vmul.f32 %v1345, %v1345
  %v1350 = vmul.f32 %v1346, %v1346
  %v1351 = vmul.f32 %v1347, %v1347
  %v1352 = vsel %vm814, %v1348, 0.0
  %v1353 = vsel %vm814, %v1349, 0.0
  %v1354 = vadd.f32 %v1352, %v1353
  %v1355 = vsel %vm814, %v1350, 0.0
  %v1356 = vadd.f32 %v1354, %v1355
  %v1357 = vsel %vm814, %v1351, 0.0
  %v1358 = vadd.f32 %v1356, %v1357
  %v1359 = vrot.slane %v1358, 4
  %v1360 = vadd.f32 %v1358, %v1359
  %v1361 = vrot.slane %v1360, 2
  %v1362 = vadd.f32 %v1360, %v1361
  %v1363 = vrot.slane %v1362, 1
  %v1364 = vadd.f32 %v1362, %v1363
  %v1365 = vmul.f32 %v1364, %v279
  %v1366 = vadd.f32 %v1365, 1e-05
  %v1367 = vrsqrt.pop %v1366
  %v1368 = vmul.f32 %v1367, %v1366
  %v1369 = vmul.f32 %v1368, %v1367
  %v1370 = vmul.f32 0.5, %v1369
  %v1371 = vsub.f32 1.5, %v1370
  %v1372 = vmul.f32 %v1367, %v1371
  %vm1373 = vweird.f32 %v1366
  %vm1374 = vweird.f32 %v1367
  %vm1375 = vmor %vm1373, %vm1374
  %v1376 = vsel %vm1375, %v1367, %v1372
  %v1377 = vmul.f32 %v1328, %v1376
  %v1379 = vperm.slane %v1377, 0
  %v1381 = vmul.f32 %v1344, %v1379
  %v1382 = vmul.f32 %v1345, %v1379
  %v1383 = vmul.f32 %v1346, %v1379
  %v1384 = vmul.f32 %v1347, %v1379
  %v1386 = vperm.slane %v1329, 0
  %v1388 = vadd.f32 %v1381, %v1386
  %v1389 = vadd.f32 %v1382, %v1386
  %v1390 = vadd.f32 %v1383, %v1386
  %v1391 = vadd.f32 %v1384, %v1386
  %v1392 = vmax.f32 %v1388, 0.0
  %v1393 = vmax.f32 %v1389, 0.0
  %v1394 = vmax.f32 %v1390, 0.0
  %v1395 = vmax.f32 %v1391, 0.0
  %1396 = vxpose.xlu0.b32.start [1/16] %v1392, 128
  %1397 = vxpose.xlu0.b32.cont [2/16] %v1393, 128
  %1398 = vxpose.xlu0.b32.cont [3/16] 0.0, 128
  %1399 = vxpose.xlu0.b32.cont [4/16] 0.0, 128
  %1400 = vxpose.xlu0.b32.cont [5/16] 0.0, 128
  %1401 = vxpose.xlu0.b32.cont [6/16] 0.0, 128
  %1402 = vxpose.xlu0.b32.cont [7/16] 0.0, 128
  %1403 = vxpose.xlu0.b32.cont [8/16] 0.0, 128
  %1404 = vxpose.xlu0.b32.cont [9/16] 0.0, 128
  %1405 = vxpose.xlu0.b32.cont [10/16] 0.0, 128
  %1406 = vxpose.xlu0.b32.cont [11/16] 0.0, 128
  %1407 = vxpose.xlu0.b32.cont [12/16] 0.0, 128
  %1408 = vxpose.xlu0.b32.cont [13/16] 0.0, 128
  %1409 = vxpose.xlu0.b32.cont [14/16] 0.0, 128
  %1410 = vxpose.xlu0.b32.cont [15/16] 0.0, 128
  %1411 = vxpose.xlu0.b32.end [16/16] 0.0, 128
  %v1412 = vpop.trf.xlu0
  %v1413 = vpop.trf.xlu0
  %v1414 = vpop.trf.xlu0
  %v1415 = vpop.trf.xlu0
  %v1416 = vpop.trf.xlu0
  %v1417 = vpop.trf.xlu0
  %v1418 = vpop.trf.xlu0
  %v1419 = vpop.trf.xlu0
  %v1420 = vpop.trf.xlu0
  %v1421 = vpop.trf.xlu0
  %v1422 = vpop.trf.xlu0
  %v1423 = vpop.trf.xlu0
  %v1424 = vpop.trf.xlu0
  %v1425 = vpop.trf.xlu0
  %v1426 = vpop.trf.xlu0
  %v1427 = vpop.trf.xlu0
  %1428 = vst.msk [vmem:[%s19] sm:$0xff] %vm415, %v1412
  %1429 = vst.msk [vmem:[%s19 + $0x8] sm:$0xff] %vm415, %v1413
  %1430 = vst.msk [vmem:[%s19 + $0x10] sm:$0xff] %vm415, %v1414
  %1431 = vst.msk [vmem:[%s19 + $0x18] sm:$0xff] %vm415, %v1415
  %1432 = vxpose.xlu0.b32.start [1/16] %v1394, 128
  %1433 = vxpose.xlu0.b32.cont [2/16] %v1395, 128
  %1434 = vxpose.xlu0.b32.cont [3/16] 0.0, 128
  %1435 = vxpose.xlu0.b32.cont [4/16] 0.0, 128
  %1436 = vxpose.xlu0.b32.cont [5/16] 0.0, 128
  %1437 = vxpose.xlu0.b32.cont [6/16] 0.0, 128
  %1438 = vxpose.xlu0.b32.cont [7/16] 0.0, 128
  %1439 = vxpose.xlu0.b32.cont [8/16] 0.0, 128
  %1440 = vxpose.xlu0.b32.cont [9/16] 0.0, 128
  %1441 = vxpose.xlu0.b32.cont [10/16] 0.0, 128
  %1442 = vxpose.xlu0.b32.cont [11/16] 0.0, 128
  %1443 = vxpose.xlu0.b32.cont [12/16] 0.0, 128
  %1444 = vxpose.xlu0.b32.cont [13/16] 0.0, 128
  %1445 = vxpose.xlu0.b32.cont [14/16] 0.0, 128
  %1446 = vxpose.xlu0.b32.cont [15/16] 0.0, 128
  %1447 = vxpose.xlu0.b32.end [16/16] 0.0, 128
  %v1448 = vpop.trf.xlu0
  %v1449 = vpop.trf.xlu0
  %v1450 = vpop.trf.xlu0
  %v1451 = vpop.trf.xlu0
  %v1452 = vpop.trf.xlu0
  %v1453 = vpop.trf.xlu0
  %v1454 = vpop.trf.xlu0
  %v1455 = vpop.trf.xlu0
  %v1456 = vpop.trf.xlu0
  %v1457 = vpop.trf.xlu0
  %v1458 = vpop.trf.xlu0
  %v1459 = vpop.trf.xlu0
  %v1460 = vpop.trf.xlu0
  %v1461 = vpop.trf.xlu0
  %v1462 = vpop.trf.xlu0
  %v1463 = vpop.trf.xlu0
  %s1464 = scalar_lea.vmem %s19, 32
  %1465 = vst.msk [vmem:[%s1464] sm:$0xff] %vm415, %v1448
  %1466 = vst.msk [vmem:[%s1464 + $0x8] sm:$0xff] %vm415, %v1449
  %1467 = vst.msk [vmem:[%s1464 + $0x10] sm:$0xff] %vm415, %v1450
  %1468 = vst.msk [vmem:[%s1464 + $0x18] sm:$0xff] %vm415, %v1451
  // Predicated region
  $region78: #{tpu_custom_call.1} parent=0 // pred_check
    _
  $region79: #{tpu_custom_call.1} parent=0 // pred_check_branch
    %1470 = sbr.rel (0) target = $region81
  $region80: #{tpu_custom_call.1} parent=0 // pred_region
    _
  $region81: #{tpu_custom_call.1} parent=0 // pred_fallthru
    _
  // Predicated region
  $region82: #{tpu_custom_call.1} parent=0 // pred_check
    _
  $region83: #{tpu_custom_call.1} parent=0 // pred_check_branch
    %1472 = sbr.rel (0) target = $region85
  $region84: #{tpu_custom_call.1} parent=0 // pred_region
    _
  $region85: #{tpu_custom_call.1} parent=0 // pred_fallthru
    _

</llo_original>
